<compile_context>
chip_gen: v7x
topology: tpu7x:2x2x1
jax: 0.10.0
libtpu: 0.0.40
codegen_flags: <defaults>
</compile_context>

<pallas_src>
import functools

import jax
import jax.numpy as jnp
from jax import lax
from jax.experimental import pallas as pl
from jax.experimental.pallas import tpu as pltpu

INPUT_SIZE = 69
HIDDEN = 128
FC1 = 64
SUBLANE = 8
LANE = 128


def _round_up(n, m):
    return ((n + m - 1) // m) * m


def lstm_mlp_kernel(x_ref, wih_ref, whh_ref, b_ref,
                    fc1w_ref, fc1b_ref, fc2w_ref, fc2b_ref,
                    out_ref, gx_ref, hs_ref, *, batch, seq):
    # x_ref:   (T*B, I_pad)   time-major, flattened, zero-padded input
    # wih_ref: (I_pad, 4H), whh_ref: (H, 4H), b_ref: (1, 4H)  (gate order i,f,g,o)
    # fc1w_ref:(H, 64), fc1b_ref:(1, 64), fc2w_ref:(64, 1), fc2b_ref:(1, 1)
    # out_ref: (T*B, 1)
    # gx_ref:  (T*B, 4H) scratch — precomputed input gates
    # hs_ref:  (T*B, H)  scratch — hidden-state history for the MLP head
    H = HIDDEN
    B = batch

    # ---- Phase 1: input projection for all timesteps in one MXU matmul. ----
    gx_ref[...] = (
        jnp.dot(x_ref[...], wih_ref[...], preferred_element_type=jnp.float32)
        + b_ref[...])

    whh = whh_ref[...]

    # ---- Phase 2: serial recurrence; h/c carried in registers. -------------
    h = jnp.zeros((B, H), jnp.float32)
    c = jnp.zeros((B, H), jnp.float32)
    # Statically unrolled (T is small and static); slices below are static and
    # 8-sublane aligned because B is padded to a multiple of 8.
    # TODO(synk): for long sequences, switch to a T-chunked grid with h/c kept
    # in VMEM scratch across grid steps instead of a full static unroll.
    for t in range(seq):
        r0 = t * B
        gates = gx_ref[r0:r0 + B, :] + jnp.dot(
            h, whh, preferred_element_type=jnp.float32)            # (B, 4H)
        i_g = jax.nn.sigmoid(gates[:, 0 * H:1 * H])
        f_g = jax.nn.sigmoid(gates[:, 1 * H:2 * H])
        g_g = jnp.tanh(gates[:, 2 * H:3 * H])
        o_g = jax.nn.sigmoid(gates[:, 3 * H:4 * H])
        c = f_g * c + i_g * g_g
        h = o_g * jnp.tanh(c)
        hs_ref[r0:r0 + B, :] = h

    # ---- Phase 3: MLP head over all timesteps at once (single store). ------
    z1 = jnp.maximum(
        jnp.dot(hs_ref[...], fc1w_ref[...],
                preferred_element_type=jnp.float32) + fc1b_ref[...], 0.0)
    out_ref[...] = jax.nn.sigmoid(
        jnp.dot(z1, fc2w_ref[...], preferred_element_type=jnp.float32)
        + fc2b_ref[...])


def simple_lstm_forward(x, params):
    """x: (B, T, INPUT_SIZE) float32 (batch_first, like the PyTorch module)."""
    B, T, I = x.shape
    assert I == INPUT_SIZE
    B_pad = _round_up(B, SUBLANE)      # pad batch to the 8-sublane tile
    I_pad = _round_up(I, LANE)         # pad contraction dim to 128 lanes

    # Time-major + zero-pad, then flatten to a (T*B_pad, I_pad) slab.
    x_tm = jnp.transpose(x, (1, 0, 2))                               # (T, B, I)
    x_tm = jnp.pad(x_tm, ((0, 0), (0, B_pad - B), (0, I_pad - I)))
    x_flat = x_tm.reshape(T * B_pad, I_pad)

    # Zero-pad W_ih rows to match the padded contraction dim (exact).
    wih_pad = jnp.pad(params["wih_t"], ((0, I_pad - I), (0, 0)))     # (I_pad, 4H)

    kernel = functools.partial(lstm_mlp_kernel, batch=B_pad, seq=T)

    out_flat = pl.pallas_call(
        kernel,
        out_shape=jax.ShapeDtypeStruct((T * B_pad, 1), jnp.float32),
        in_specs=[pl.BlockSpec(memory_space=pltpu.MemorySpace.VMEM)] * 8,
        out_specs=pl.BlockSpec(memory_space=pltpu.MemorySpace.VMEM),
        scratch_shapes=[
            pltpu.VMEM((T * B_pad, 4 * HIDDEN), jnp.float32),   # gates_x
            pltpu.VMEM((T * B_pad, HIDDEN), jnp.float32),       # h history
        ],
    )(x_flat,
      wih_pad, params["whh_t"], params["b"],
      params["fc1w_t"], params["fc1b"], params["fc2w_t"], params["fc2b"])

    out = out_flat.reshape(T, B_pad, 1)[:, :B, :]    # drop padded batch rows
    return jnp.transpose(out, (1, 0, 2))             # (B, T, 1), batch_first


def init_params(key):
    """Deterministic synthetic params, PyTorch-style uniform(-1/sqrt(H), 1/sqrt(H))."""
    ks = jax.random.split(key, 8)
    bound = 1.0 / jnp.sqrt(HIDDEN)

    def u(k, shape, b):
        return jax.random.uniform(k, shape, jnp.float32, -b, b)

    # nn.LSTM stores W_ih (4H, I), W_hh (4H, H), b_ih (4H,), b_hh (4H,)
    w_ih = u(ks[0], (4 * HIDDEN, INPUT_SIZE), bound)
    w_hh = u(ks[1], (4 * HIDDEN, HIDDEN), bound)
    b_ih = u(ks[2], (4 * HIDDEN,), bound)
    b_hh = u(ks[3], (4 * HIDDEN,), bound)
    # nn.Linear stores W (out, in), b (out,)
    fc1_w = u(ks[4], (FC1, HIDDEN), 1.0 / jnp.sqrt(HIDDEN))
    fc1_b = u(ks[5], (FC1,), 1.0 / jnp.sqrt(HIDDEN))
    fc2_w = u(ks[6], (1, FC1), 1.0 / jnp.sqrt(FC1))
    fc2_b = u(ks[7], (1,), 1.0 / jnp.sqrt(FC1))

    return {
        "wih_t": w_ih.T,                             # (I, 4H)
        "whh_t": w_hh.T,                             # (H, 4H)
        "b": (b_ih + b_hh).reshape(1, 4 * HIDDEN),   # (1, 4H)
        "fc1w_t": fc1_w.T,                           # (H, 64)
        "fc1b": fc1_b.reshape(1, FC1),               # (1, 64)
        "fc2w_t": fc2_w.T,                           # (64, 1)
        "fc2b": fc2_b.reshape(1, 1),                 # (1, 1)
    }


def reference_forward(x, params):
    """Pure-JAX reference of the PyTorch forward (for a sanity check)."""
    B, T, _ = x.shape
    H = HIDDEN

    def cell(carry, x_t):
        h, c = carry
        gates = x_t @ params["wih_t"] + h @ params["whh_t"] + params["b"]
        i_g = jax.nn.sigmoid(gates[:, 0 * H:1 * H])
        f_g = jax.nn.sigmoid(gates[:, 1 * H:2 * H])
        g_g = jnp.tanh(gates[:, 2 * H:3 * H])
        o_g = jax.nn.sigmoid(gates[:, 3 * H:4 * H])
        c = f_g * c + i_g * g_g
        h = o_g * jnp.tanh(c)
        return (h, c), h

    h0 = jnp.zeros((B, H), jnp.float32)
    c0 = jnp.zeros((B, H), jnp.float32)
    _, hs = lax.scan(cell, (h0, c0), jnp.transpose(x, (1, 0, 2)))  # (T, B, H)
    hs = jnp.transpose(hs, (1, 0, 2))                              # (B, T, H)
    z1 = jnp.maximum(hs @ params["fc1w_t"] + params["fc1b"], 0.0)
    z2 = jax.nn.sigmoid(z1 @ params["fc2w_t"] + params["fc2b"])
    return z2


if __name__ == "__main__":
    B, T = 2, 8
    key = jax.random.PRNGKey(0)
    k_x, k_p = jax.random.split(key)
    x = jax.random.normal(k_x, (B, T, INPUT_SIZE), dtype=jnp.float32)
    params = init_params(k_p)

    out = simple_lstm_forward(x, params)
    out = jax.block_until_ready(out)

    assert out.shape == (B, T, 1), out.shape
    ref = reference_forward(x, params)
    assert jnp.allclose(out, ref, rtol=1e-3, atol=1e-3), \
        f"max abs err {jnp.max(jnp.abs(out - ref))}"

    print("KERNEL_OK")
</pallas_src>

<mosaic_0001>
module attributes {stable_mosaic.version = 11 : i64} {
  func.func @lstm_mlp_kernel(%arg0: memref<64x128xf32, #tpu.memory_space<vmem>>, %arg1: memref<128x512xf32, #tpu.memory_space<vmem>>, %arg2: memref<128x512xf32, #tpu.memory_space<vmem>>, %arg3: memref<1x512xf32, #tpu.memory_space<vmem>>, %arg4: memref<128x64xf32, #tpu.memory_space<vmem>>, %arg5: memref<1x64xf32, #tpu.memory_space<vmem>>, %arg6: memref<64x1xf32, #tpu.memory_space<vmem>>, %arg7: memref<1x1xf32, #tpu.memory_space<vmem>>, %arg8: memref<64x1xf32, #tpu.memory_space<vmem>>, %arg9: memref<64x512xf32, #tpu.memory_space<vmem>>, %arg10: memref<64x128xf32, #tpu.memory_space<vmem>>) attributes {dimension_semantics = [], scalar_prefetch = 0 : i64, scratch_operands = 2 : i64, tpu.core_type = #tpu.core_type<tc>} {
    %c0 = arith.constant 0 : index
    %c0_0 = arith.constant 0 : index
    %0 = vector.load %arg0[%c0, %c0_0] : memref<64x128xf32, #tpu.memory_space<vmem>>, vector<64x128xf32>
    %c0_1 = arith.constant 0 : index
    %c0_2 = arith.constant 0 : index
    %1 = vector.load %arg1[%c0_1, %c0_2] : memref<128x512xf32, #tpu.memory_space<vmem>>, vector<128x512xf32>
    %cst = arith.constant dense<0.000000e+00> : vector<64x512xf32>
    %2 = tpu.matmul %0, %1, %cst {dimension_numbers = #tpu.dot_dimension_numbers<[1], [0], [0], [1], [0, 0, 1, 1], [], []>} : vector<64x128xf32>, vector<128x512xf32>, vector<64x512xf32> -> vector<64x512xf32>
    %c0_3 = arith.constant 0 : index
    %c0_4 = arith.constant 0 : index
    %3 = vector.load %arg3[%c0_3, %c0_4] : memref<1x512xf32, #tpu.memory_space<vmem>>, vector<1x512xf32>
    %4 = vector.broadcast %3 : vector<1x512xf32> to vector<64x512xf32>
    %5 = arith.addf %2, %4 : vector<64x512xf32>
    %c0_5 = arith.constant 0 : index
    %c0_6 = arith.constant 0 : index
    %6 = vector.load %arg9[%c0_5, %c0_6] : memref<64x512xf32, #tpu.memory_space<vmem>>, vector<64x512xf32>
    tpu.vector_store %arg9[%c0_5, %c0_6], %5 {strides = array<i32>} : memref<64x512xf32, #tpu.memory_space<vmem>>, vector<64x512xf32>,
    %c0_7 = arith.constant 0 : index
    %c0_8 = arith.constant 0 : index
    %7 = vector.load %arg2[%c0_7, %c0_8] : memref<128x512xf32, #tpu.memory_space<vmem>>, vector<128x512xf32>
    %cst_9 = arith.constant 0.000000e+00 : f32
    %8 = vector.broadcast %cst_9 : f32 to vector<8x128xf32>
    %cst_10 = arith.constant 0.000000e+00 : f32
    %9 = vector.broadcast %cst_10 : f32 to vector<8x128xf32>
    %c0_11 = arith.constant 0 : index
    %c0_12 = arith.constant 0 : index
    %10 = vector.load %arg9[%c0_11, %c0_12] : memref<64x512xf32, #tpu.memory_space<vmem>>, vector<8x512xf32>
    %cst_13 = arith.constant dense<0.000000e+00> : vector<8x512xf32>
    %11 = tpu.matmul %8, %7, %cst_13 {dimension_numbers = #tpu.dot_dimension_numbers<[1], [0], [0], [1], [0, 0, 1, 1], [], []>} : vector<8x128xf32>, vector<128x512xf32>, vector<8x512xf32> -> vector<8x512xf32>
    %12 = arith.addf %10, %11 : vector<8x512xf32>
    %13 = vector.extract_strided_slice %12 {offsets = [0, 0], sizes = [8, 128], strides = [1, 1]} : vector<8x512xf32> to vector<8x128xf32>
    %14 = arith.negf %13 : vector<8x128xf32>
    %15 = math.exp %14 : vector<8x128xf32>
    %cst_14 = arith.constant 1.000000e+00 : f32
    %16 = vector.broadcast %cst_14 : f32 to vector<8x128xf32>
    %17 = arith.addf %16, %15 : vector<8x128xf32>
    %18 = arith.divf %16, %17 : vector<8x128xf32>
    %19 = vector.extract_strided_slice %12 {offsets = [0, 128], sizes = [8, 128], strides = [1, 1]} : vector<8x512xf32> to vector<8x128xf32>
    %20 = arith.negf %19 : vector<8x128xf32>
    %21 = math.exp %20 : vector<8x128xf32>
    %cst_15 = arith.constant 1.000000e+00 : f32
    %22 = vector.broadcast %cst_15 : f32 to vector<8x128xf32>
    %23 = arith.addf %22, %21 : vector<8x128xf32>
    %24 = arith.divf %22, %23 : vector<8x128xf32>
    %25 = vector.extract_strided_slice %12 {offsets = [0, 256], sizes = [8, 128], strides = [1, 1]} : vector<8x512xf32> to vector<8x128xf32>
    %26 = math.tanh %25 : vector<8x128xf32>
    %27 = vector.extract_strided_slice %12 {offsets = [0, 384], sizes = [8, 128], strides = [1, 1]} : vector<8x512xf32> to vector<8x128xf32>
    %28 = arith.negf %27 : vector<8x128xf32>
    %29 = math.exp %28 : vector<8x128xf32>
    %cst_16 = arith.constant 1.000000e+00 : f32
    %30 = vector.broadcast %cst_16 : f32 to vector<8x128xf32>
    %31 = arith.addf %30, %29 : vector<8x128xf32>
    %32 = arith.divf %30, %31 : vector<8x128xf32>
    %33 = arith.mulf %24, %9 : vector<8x128xf32>
    %34 = arith.mulf %18, %26 : vector<8x128xf32>
    %35 = arith.addf %33, %34 : vector<8x128xf32>
    %36 = math.tanh %35 : vector<8x128xf32>
    %37 = arith.mulf %32, %36 : vector<8x128xf32>
    %c0_17 = arith.constant 0 : index
    %c0_18 = arith.constant 0 : index
    %38 = vector.load %arg10[%c0_17, %c0_18] : memref<64x128xf32, #tpu.memory_space<vmem>>, vector<8x128xf32>
    tpu.vector_store %arg10[%c0_17, %c0_18], %37 {strides = array<i32>} : memref<64x128xf32, #tpu.memory_space<vmem>>, vector<8x128xf32>,
    %c8 = arith.constant 8 : index
    %c0_19 = arith.constant 0 : index
    %39 = vector.load %arg9[%c8, %c0_19] : memref<64x512xf32, #tpu.memory_space<vmem>>, vector<8x512xf32>
    %cst_20 = arith.constant dense<0.000000e+00> : vector<8x512xf32>
    %40 = tpu.matmul %37, %7, %cst_20 {dimension_numbers = #tpu.dot_dimension_numbers<[1], [0], [0], [1], [0, 0, 1, 1], [], []>} : vector<8x128xf32>, vector<128x512xf32>, vector<8x512xf32> -> vector<8x512xf32>
    %41 = arith.addf %39, %40 : vector<8x512xf32>
    %42 = vector.extract_strided_slice %41 {offsets = [0, 0], sizes = [8, 128], strides = [1, 1]} : vector<8x512xf32> to vector<8x128xf32>
    %43 = arith.negf %42 : vector<8x128xf32>
    %44 = math.exp %43 : vector<8x128xf32>
    %cst_21 = arith.constant 1.000000e+00 : f32
    %45 = vector.broadcast %cst_21 : f32 to vector<8x128xf32>
    %46 = arith.addf %45, %44 : vector<8x128xf32>
    %47 = arith.divf %45, %46 : vector<8x128xf32>
    %48 = vector.extract_strided_slice %41 {offsets = [0, 128], sizes = [8, 128], strides = [1, 1]} : vector<8x512xf32> to vector<8x128xf32>
    %49 = arith.negf %48 : vector<8x128xf32>
    %50 = math.exp %49 : vector<8x128xf32>
    %cst_22 = arith.constant 1.000000e+00 : f32
    %51 = vector.broadcast %cst_22 : f32 to vector<8x128xf32>
    %52 = arith.addf %51, %50 : vector<8x128xf32>
    %53 = arith.divf %51, %52 : vector<8x128xf32>
    %54 = vector.extract_strided_slice %41 {offsets = [0, 256], sizes = [8, 128], strides = [1, 1]} : vector<8x512xf32> to vector<8x128xf32>
    %55 = math.tanh %54 : vector<8x128xf32>
    %56 = vector.extract_strided_slice %41 {offsets = [0, 384], sizes = [8, 128], strides = [1, 1]} : vector<8x512xf32> to vector<8x128xf32>
    %57 = arith.negf %56 : vector<8x128xf32>
    %58 = math.exp %57 : vector<8x128xf32>
    %cst_23 = arith.constant 1.000000e+00 : f32
    %59 = vector.broadcast %cst_23 : f32 to vector<8x128xf32>
    %60 = arith.addf %59, %58 : vector<8x128xf32>
    %61 = arith.divf %59, %60 : vector<8x128xf32>
    %62 = arith.mulf %53, %35 : vector<8x128xf32>
    %63 = arith.mulf %47, %55 : vector<8x128xf32>
    %64 = arith.addf %62, %63 : vector<8x128xf32>
    %65 = math.tanh %64 : vector<8x128xf32>
    %66 = arith.mulf %61, %65 : vector<8x128xf32>
    %c8_24 = arith.constant 8 : index
    %c0_25 = arith.constant 0 : index
    %67 = vector.load %arg10[%c8_24, %c0_25] : memref<64x128xf32, #tpu.memory_space<vmem>>, vector<8x128xf32>
    tpu.vector_store %arg10[%c8_24, %c0_25], %66 {strides = array<i32>} : memref<64x128xf32, #tpu.memory_space<vmem>>, vector<8x128xf32>,
    %c16 = arith.constant 16 : index
    %c0_26 = arith.constant 0 : index
    %68 = vector.load %arg9[%c16, %c0_26] : memref<64x512xf32, #tpu.memory_space<vmem>>, vector<8x512xf32>
    %cst_27 = arith.constant dense<0.000000e+00> : vector<8x512xf32>
    %69 = tpu.matmul %66, %7, %cst_27 {dimension_numbers = #tpu.dot_dimension_numbers<[1], [0], [0], [1], [0, 0, 1, 1], [], []>} : vector<8x128xf32>, vector<128x512xf32>, vector<8x512xf32> -> vector<8x512xf32>
    %70 = arith.addf %68, %69 : vector<8x512xf32>
    %71 = vector.extract_strided_slice %70 {offsets = [0, 0], sizes = [8, 128], strides = [1, 1]} : vector<8x512xf32> to vector<8x128xf32>
    %72 = arith.negf %71 : vector<8x128xf32>
    %73 = math.exp %72 : vector<8x128xf32>
    %cst_28 = arith.constant 1.000000e+00 : f32
    %74 = vector.broadcast %cst_28 : f32 to vector<8x128xf32>
    %75 = arith.addf %74, %73 : vector<8x128xf32>
    %76 = arith.divf %74, %75 : vector<8x128xf32>
    %77 = vector.extract_strided_slice %70 {offsets = [0, 128], sizes = [8, 128], strides = [1, 1]} : vector<8x512xf32> to vector<8x128xf32>
    %78 = arith.negf %77 : vector<8x128xf32>
    %79 = math.exp %78 : vector<8x128xf32>
    %cst_29 = arith.constant 1.000000e+00 : f32
    %80 = vector.broadcast %cst_29 : f32 to vector<8x128xf32>
    %81 = arith.addf %80, %79 : vector<8x128xf32>
    %82 = arith.divf %80, %81 : vector<8x128xf32>
    %83 = vector.extract_strided_slice %70 {offsets = [0, 256], sizes = [8, 128], strides = [1, 1]} : vector<8x512xf32> to vector<8x128xf32>
    %84 = math.tanh %83 : vector<8x128xf32>
    %85 = vector.extract_strided_slice %70 {offsets = [0, 384], sizes = [8, 128], strides = [1, 1]} : vector<8x512xf32> to vector<8x128xf32>
    %86 = arith.negf %85 : vector<8x128xf32>
    %87 = math.exp %86 : vector<8x128xf32>
    %cst_30 = arith.constant 1.000000e+00 : f32
    %88 = vector.broadcast %cst_30 : f32 to vector<8x128xf32>
    %89 = arith.addf %88, %87 : vector<8x128xf32>
    %90 = arith.divf %88, %89 : vector<8x128xf32>
    %91 = arith.mulf %82, %64 : vector<8x128xf32>
    %92 = arith.mulf %76, %84 : vector<8x128xf32>
    %93 = arith.addf %91, %92 : vector<8x128xf32>
    %94 = math.tanh %93 : vector<8x128xf32>
    %95 = arith.mulf %90, %94 : vector<8x128xf32>
    %c16_31 = arith.constant 16 : index
    %c0_32 = arith.constant 0 : index
    %96 = vector.load %arg10[%c16_31, %c0_32] : memref<64x128xf32, #tpu.memory_space<vmem>>, vector<8x128xf32>
    tpu.vector_store %arg10[%c16_31, %c0_32], %95 {strides = array<i32>} : memref<64x128xf32, #tpu.memory_space<vmem>>, vector<8x128xf32>,
    %c24 = arith.constant 24 : index
    %c0_33 = arith.constant 0 : index
    %97 = vector.load %arg9[%c24, %c0_33] : memref<64x512xf32, #tpu.memory_space<vmem>>, vector<8x512xf32>
    %cst_34 = arith.constant dense<0.000000e+00> : vector<8x512xf32>
    %98 = tpu.matmul %95, %7, %cst_34 {dimension_numbers = #tpu.dot_dimension_numbers<[1], [0], [0], [1], [0, 0, 1, 1], [], []>} : vector<8x128xf32>, vector<128x512xf32>, vector<8x512xf32> -> vector<8x512xf32>
    %99 = arith.addf %97, %98 : vector<8x512xf32>
    %100 = vector.extract_strided_slice %99 {offsets = [0, 0], sizes = [8, 128], strides = [1, 1]} : vector<8x512xf32> to vector<8x128xf32>
    %101 = arith.negf %100 : vector<8x128xf32>
    %102 = math.exp %101 : vector<8x128xf32>
    %cst_35 = arith.constant 1.000000e+00 : f32
    %103 = vector.broadcast %cst_35 : f32 to vector<8x128xf32>
    %104 = arith.addf %103, %102 : vector<8x128xf32>
    %105 = arith.divf %103, %104 : vector<8x128xf32>
    %106 = vector.extract_strided_slice %99 {offsets = [0, 128], sizes = [8, 128], strides = [1, 1]} : vector<8x512xf32> to vector<8x128xf32>
    %107 = arith.negf %106 : vector<8x128xf32>
    %108 = math.exp %107 : vector<8x128xf32>
    %cst_36 = arith.constant 1.000000e+00 : f32
    %109 = vector.broadcast %cst_36 : f32 to vector<8x128xf32>
    %110 = arith.addf %109, %108 : vector<8x128xf32>
    %111 = arith.divf %109, %110 : vector<8x128xf32>
    %112 = vector.extract_strided_slice %99 {offsets = [0, 256], sizes = [8, 128], strides = [1, 1]} : vector<8x512xf32> to vector<8x128xf32>
    %113 = math.tanh %112 : vector<8x128xf32>
    %114 = vector.extract_strided_slice %99 {offsets = [0, 384], sizes = [8, 128], strides = [1, 1]} : vector<8x512xf32> to vector<8x128xf32>
    %115 = arith.negf %114 : vector<8x128xf32>
    %116 = math.exp %115 : vector<8x128xf32>
    %cst_37 = arith.constant 1.000000e+00 : f32
    %117 = vector.broadcast %cst_37 : f32 to vector<8x128xf32>
    %118 = arith.addf %117, %116 : vector<8x128xf32>
    %119 = arith.divf %117, %118 : vector<8x128xf32>
    %120 = arith.mulf %111, %93 : vector<8x128xf32>
    %121 = arith.mulf %105, %113 : vector<8x128xf32>
    %122 = arith.addf %120, %121 : vector<8x128xf32>
    %123 = math.tanh %122 : vector<8x128xf32>
    %124 = arith.mulf %119, %123 : vector<8x128xf32>
    %c24_38 = arith.constant 24 : index
    %c0_39 = arith.constant 0 : index
    %125 = vector.load %arg10[%c24_38, %c0_39] : memref<64x128xf32, #tpu.memory_space<vmem>>, vector<8x128xf32>
    tpu.vector_store %arg10[%c24_38, %c0_39], %124 {strides = array<i32>} : memref<64x128xf32, #tpu.memory_space<vmem>>, vector<8x128xf32>,
    %c32 = arith.constant 32 : index
    %c0_40 = arith.constant 0 : index
    %126 = vector.load %arg9[%c32, %c0_40] : memref<64x512xf32, #tpu.memory_space<vmem>>, vector<8x512xf32>
    %cst_41 = arith.constant dense<0.000000e+00> : vector<8x512xf32>
    %127 = tpu.matmul %124, %7, %cst_41 {dimension_numbers = #tpu.dot_dimension_numbers<[1], [0], [0], [1], [0, 0, 1, 1], [], []>} : vector<8x128xf32>, vector<128x512xf32>, vector<8x512xf32> -> vector<8x512xf32>
    %128 = arith.addf %126, %127 : vector<8x512xf32>
    %129 = vector.extract_strided_slice %128 {offsets = [0, 0], sizes = [8, 128], strides = [1, 1]} : vector<8x512xf32> to vector<8x128xf32>
    %130 = arith.negf %129 : vector<8x128xf32>
    %131 = math.exp %130 : vector<8x128xf32>
    %cst_42 = arith.constant 1.000000e+00 : f32
    %132 = vector.broadcast %cst_42 : f32 to vector<8x128xf32>
    %133 = arith.addf %132, %131 : vector<8x128xf32>
    %134 = arith.divf %132, %133 : vector<8x128xf32>
    %135 = vector.extract_strided_slice %128 {offsets = [0, 128], sizes = [8, 128], strides = [1, 1]} : vector<8x512xf32> to vector<8x128xf32>
    %136 = arith.negf %135 : vector<8x128xf32>
    %137 = math.exp %136 : vector<8x128xf32>
    %cst_43 = arith.constant 1.000000e+00 : f32
    %138 = vector.broadcast %cst_43 : f32 to vector<8x128xf32>
    %139 = arith.addf %138, %137 : vector<8x128xf32>
    %140 = arith.divf %138, %139 : vector<8x128xf32>
    %141 = vector.extract_strided_slice %128 {offsets = [0, 256], sizes = [8, 128], strides = [1, 1]} : vector<8x512xf32> to vector<8x128xf32>
    %142 = math.tanh %141 : vector<8x128xf32>
    %143 = vector.extract_strided_slice %128 {offsets = [0, 384], sizes = [8, 128], strides = [1, 1]} : vector<8x512xf32> to vector<8x128xf32>
    %144 = arith.negf %143 : vector<8x128xf32>
    %145 = math.exp %144 : vector<8x128xf32>
    %cst_44 = arith.constant 1.000000e+00 : f32
    %146 = vector.broadcast %cst_44 : f32 to vector<8x128xf32>
    %147 = arith.addf %146, %145 : vector<8x128xf32>
    %148 = arith.divf %146, %147 : vector<8x128xf32>
    %149 = arith.mulf %140, %122 : vector<8x128xf32>
    %150 = arith.mulf %134, %142 : vector<8x128xf32>
    %151 = arith.addf %149, %150 : vector<8x128xf32>
    %152 = math.tanh %151 : vector<8x128xf32>
    %153 = arith.mulf %148, %152 : vector<8x128xf32>
    %c32_45 = arith.constant 32 : index
    %c0_46 = arith.constant 0 : index
    %154 = vector.load %arg10[%c32_45, %c0_46] : memref<64x128xf32, #tpu.memory_space<vmem>>, vector<8x128xf32>
    tpu.vector_store %arg10[%c32_45, %c0_46], %153 {strides = array<i32>} : memref<64x128xf32, #tpu.memory_space<vmem>>, vector<8x128xf32>,
    %c40 = arith.constant 40 : index
    %c0_47 = arith.constant 0 : index
    %155 = vector.load %arg9[%c40, %c0_47] : memref<64x512xf32, #tpu.memory_space<vmem>>, vector<8x512xf32>
    %cst_48 = arith.constant dense<0.000000e+00> : vector<8x512xf32>
    %156 = tpu.matmul %153, %7, %cst_48 {dimension_numbers = #tpu.dot_dimension_numbers<[1], [0], [0], [1], [0, 0, 1, 1], [], []>} : vector<8x128xf32>, vector<128x512xf32>, vector<8x512xf32> -> vector<8x512xf32>
    %157 = arith.addf %155, %156 : vector<8x512xf32>
    %158 = vector.extract_strided_slice %157 {offsets = [0, 0], sizes = [8, 128], strides = [1, 1]} : vector<8x512xf32> to vector<8x128xf32>
    %159 = arith.negf %158 : vector<8x128xf32>
    %160 = math.exp %159 : vector<8x128xf32>
    %cst_49 = arith.constant 1.000000e+00 : f32
    %161 = vector.broadcast %cst_49 : f32 to vector<8x128xf32>
    %162 = arith.addf %161, %160 : vector<8x128xf32>
    %163 = arith.divf %161, %162 : vector<8x128xf32>
    %164 = vector.extract_strided_slice %157 {offsets = [0, 128], sizes = [8, 128], strides = [1, 1]} : vector<8x512xf32> to vector<8x128xf32>
    %165 = arith.negf %164 : vector<8x128xf32>
    %166 = math.exp %165 : vector<8x128xf32>
    %cst_50 = arith.constant 1.000000e+00 : f32
    %167 = vector.broadcast %cst_50 : f32 to vector<8x128xf32>
    %168 = arith.addf %167, %166 : vector<8x128xf32>
    %169 = arith.divf %167, %168 : vector<8x128xf32>
    %170 = vector.extract_strided_slice %157 {offsets = [0, 256], sizes = [8, 128], strides = [1, 1]} : vector<8x512xf32> to vector<8x128xf32>
    %171 = math.tanh %170 : vector<8x128xf32>
    %172 = vector.extract_strided_slice %157 {offsets = [0, 384], sizes = [8, 128], strides = [1, 1]} : vector<8x512xf32> to vector<8x128xf32>
    %173 = arith.negf %172 : vector<8x128xf32>
    %174 = math.exp %173 : vector<8x128xf32>
    %cst_51 = arith.constant 1.000000e+00 : f32
    %175 = vector.broadcast %cst_51 : f32 to vector<8x128xf32>
    %176 = arith.addf %175, %174 : vector<8x128xf32>
    %177 = arith.divf %175, %176 : vector<8x128xf32>
    %178 = arith.mulf %169, %151 : vector<8x128xf32>
    %179 = arith.mulf %163, %171 : vector<8x128xf32>
    %180 = arith.addf %178, %179 : vector<8x128xf32>
    %181 = math.tanh %180 : vector<8x128xf32>
    %182 = arith.mulf %177, %181 : vector<8x128xf32>
    %c40_52 = arith.constant 40 : index
    %c0_53 = arith.constant 0 : index
    %183 = vector.load %arg10[%c40_52, %c0_53] : memref<64x128xf32, #tpu.memory_space<vmem>>, vector<8x128xf32>
    tpu.vector_store %arg10[%c40_52, %c0_53], %182 {strides = array<i32>} : memref<64x128xf32, #tpu.memory_space<vmem>>, vector<8x128xf32>,
    %c48 = arith.constant 48 : index
    %c0_54 = arith.constant 0 : index
    %184 = vector.load %arg9[%c48, %c0_54] : memref<64x512xf32, #tpu.memory_space<vmem>>, vector<8x512xf32>
    %cst_55 = arith.constant dense<0.000000e+00> : vector<8x512xf32>
    %185 = tpu.matmul %182, %7, %cst_55 {dimension_numbers = #tpu.dot_dimension_numbers<[1], [0], [0], [1], [0, 0, 1, 1], [], []>} : vector<8x128xf32>, vector<128x512xf32>, vector<8x512xf32> -> vector<8x512xf32>
    %186 = arith.addf %184, %185 : vector<8x512xf32>
    %187 = vector.extract_strided_slice %186 {offsets = [0, 0], sizes = [8, 128], strides = [1, 1]} : vector<8x512xf32> to vector<8x128xf32>
    %188 = arith.negf %187 : vector<8x128xf32>
    %189 = math.exp %188 : vector<8x128xf32>
    %cst_56 = arith.constant 1.000000e+00 : f32
    %190 = vector.broadcast %cst_56 : f32 to vector<8x128xf32>
    %191 = arith.addf %190, %189 : vector<8x128xf32>
    %192 = arith.divf %190, %191 : vector<8x128xf32>
    %193 = vector.extract_strided_slice %186 {offsets = [0, 128], sizes = [8, 128], strides = [1, 1]} : vector<8x512xf32> to vector<8x128xf32>
    %194 = arith.negf %193 : vector<8x128xf32>
    %195 = math.exp %194 : vector<8x128xf32>
    %cst_57 = arith.constant 1.000000e+00 : f32
    %196 = vector.broadcast %cst_57 : f32 to vector<8x128xf32>
    %197 = arith.addf %196, %195 : vector<8x128xf32>
    %198 = arith.divf %196, %197 : vector<8x128xf32>
    %199 = vector.extract_strided_slice %186 {offsets = [0, 256], sizes = [8, 128], strides = [1, 1]} : vector<8x512xf32> to vector<8x128xf32>
    %200 = math.tanh %199 : vector<8x128xf32>
    %201 = vector.extract_strided_slice %186 {offsets = [0, 384], sizes = [8, 128], strides = [1, 1]} : vector<8x512xf32> to vector<8x128xf32>
    %202 = arith.negf %201 : vector<8x128xf32>
    %203 = math.exp %202 : vector<8x128xf32>
    %cst_58 = arith.constant 1.000000e+00 : f32
    %204 = vector.broadcast %cst_58 : f32 to vector<8x128xf32>
    %205 = arith.addf %204, %203 : vector<8x128xf32>
    %206 = arith.divf %204, %205 : vector<8x128xf32>
    %207 = arith.mulf %198, %180 : vector<8x128xf32>
    %208 = arith.mulf %192, %200 : vector<8x128xf32>
    %209 = arith.addf %207, %208 : vector<8x128xf32>
    %210 = math.tanh %209 : vector<8x128xf32>
    %211 = arith.mulf %206, %210 : vector<8x128xf32>
    %c48_59 = arith.constant 48 : index
    %c0_60 = arith.constant 0 : index
    %212 = vector.load %arg10[%c48_59, %c0_60] : memref<64x128xf32, #tpu.memory_space<vmem>>, vector<8x128xf32>
    tpu.vector_store %arg10[%c48_59, %c0_60], %211 {strides = array<i32>} : memref<64x128xf32, #tpu.memory_space<vmem>>, vector<8x128xf32>,
    %c56 = arith.constant 56 : index
    %c0_61 = arith.constant 0 : index
    %213 = vector.load %arg9[%c56, %c0_61] : memref<64x512xf32, #tpu.memory_space<vmem>>, vector<8x512xf32>
    %cst_62 = arith.constant dense<0.000000e+00> : vector<8x512xf32>
    %214 = tpu.matmul %211, %7, %cst_62 {dimension_numbers = #tpu.dot_dimension_numbers<[1], [0], [0], [1], [0, 0, 1, 1], [], []>} : vector<8x128xf32>, vector<128x512xf32>, vector<8x512xf32> -> vector<8x512xf32>
    %215 = arith.addf %213, %214 : vector<8x512xf32>
    %216 = vector.extract_strided_slice %215 {offsets = [0, 0], sizes = [8, 128], strides = [1, 1]} : vector<8x512xf32> to vector<8x128xf32>
    %217 = arith.negf %216 : vector<8x128xf32>
    %218 = math.exp %217 : vector<8x128xf32>
    %cst_63 = arith.constant 1.000000e+00 : f32
    %219 = vector.broadcast %cst_63 : f32 to vector<8x128xf32>
    %220 = arith.addf %219, %218 : vector<8x128xf32>
    %221 = arith.divf %219, %220 : vector<8x128xf32>
    %222 = vector.extract_strided_slice %215 {offsets = [0, 128], sizes = [8, 128], strides = [1, 1]} : vector<8x512xf32> to vector<8x128xf32>
    %223 = arith.negf %222 : vector<8x128xf32>
    %224 = math.exp %223 : vector<8x128xf32>
    %cst_64 = arith.constant 1.000000e+00 : f32
    %225 = vector.broadcast %cst_64 : f32 to vector<8x128xf32>
    %226 = arith.addf %225, %224 : vector<8x128xf32>
    %227 = arith.divf %225, %226 : vector<8x128xf32>
    %228 = vector.extract_strided_slice %215 {offsets = [0, 256], sizes = [8, 128], strides = [1, 1]} : vector<8x512xf32> to vector<8x128xf32>
    %229 = math.tanh %228 : vector<8x128xf32>
    %230 = vector.extract_strided_slice %215 {offsets = [0, 384], sizes = [8, 128], strides = [1, 1]} : vector<8x512xf32> to vector<8x128xf32>
    %231 = arith.negf %230 : vector<8x128xf32>
    %232 = math.exp %231 : vector<8x128xf32>
    %cst_65 = arith.constant 1.000000e+00 : f32
    %233 = vector.broadcast %cst_65 : f32 to vector<8x128xf32>
    %234 = arith.addf %233, %232 : vector<8x128xf32>
    %235 = arith.divf %233, %234 : vector<8x128xf32>
    %236 = arith.mulf %227, %209 : vector<8x128xf32>
    %237 = arith.mulf %221, %229 : vector<8x128xf32>
    %238 = arith.addf %236, %237 : vector<8x128xf32>
    %239 = math.tanh %238 : vector<8x128xf32>
    %240 = arith.mulf %235, %239 : vector<8x128xf32>
    %c56_66 = arith.constant 56 : index
    %c0_67 = arith.constant 0 : index
    %241 = vector.load %arg10[%c56_66, %c0_67] : memref<64x128xf32, #tpu.memory_space<vmem>>, vector<8x128xf32>
    tpu.vector_store %arg10[%c56_66, %c0_67], %240 {strides = array<i32>} : memref<64x128xf32, #tpu.memory_space<vmem>>, vector<8x128xf32>,
    %c0_68 = arith.constant 0 : index
    %c0_69 = arith.constant 0 : index
    %242 = vector.load %arg10[%c0_68, %c0_69] : memref<64x128xf32, #tpu.memory_space<vmem>>, vector<64x128xf32>
    %c0_70 = arith.constant 0 : index
    %c0_71 = arith.constant 0 : index
    %243 = vector.load %arg4[%c0_70, %c0_71] : memref<128x64xf32, #tpu.memory_space<vmem>>, vector<128x64xf32>
    %cst_72 = arith.constant dense<0.000000e+00> : vector<64x64xf32>
    %244 = tpu.matmul %242, %243, %cst_72 {dimension_numbers = #tpu.dot_dimension_numbers<[1], [0], [0], [1], [0, 0, 1, 1], [], []>} : vector<64x128xf32>, vector<128x64xf32>, vector<64x64xf32> -> vector<64x64xf32>
    %c0_73 = arith.constant 0 : index
    %c0_74 = arith.constant 0 : index
    %245 = vector.load %arg5[%c0_73, %c0_74] : memref<1x64xf32, #tpu.memory_space<vmem>>, vector<1x64xf32>
    %246 = vector.broadcast %245 : vector<1x64xf32> to vector<64x64xf32>
    %247 = arith.addf %244, %246 : vector<64x64xf32>
    %cst_75 = arith.constant 0.000000e+00 : f32
    %248 = vector.broadcast %cst_75 : f32 to vector<64x64xf32>
    %249 = arith.maximumf %247, %248 : vector<64x64xf32>
    %c0_76 = arith.constant 0 : index
    %c0_77 = arith.constant 0 : index
    %250 = vector.load %arg6[%c0_76, %c0_77] : memref<64x1xf32, #tpu.memory_space<vmem>>, vector<64x1xf32>
    %cst_78 = arith.constant dense<0.000000e+00> : vector<64x1xf32>
    %251 = tpu.matmul %249, %250, %cst_78 {dimension_numbers = #tpu.dot_dimension_numbers<[1], [0], [0], [1], [0, 0, 1, 1], [], []>} : vector<64x64xf32>, vector<64x1xf32>, vector<64x1xf32> -> vector<64x1xf32>
    %c0_79 = arith.constant 0 : index
    %c0_80 = arith.constant 0 : index
    %252 = vector.load %arg7[%c0_79, %c0_80] : memref<1x1xf32, #tpu.memory_space<vmem>>, vector<1x1xf32>
    %253 = vector.broadcast %252 : vector<1x1xf32> to vector<64x1xf32>
    %254 = arith.addf %251, %253 : vector<64x1xf32>
    %255 = arith.negf %254 : vector<64x1xf32>
    %256 = math.exp %255 : vector<64x1xf32>
    %cst_81 = arith.constant 1.000000e+00 : f32
    %257 = vector.broadcast %cst_81 : f32 to vector<64x1xf32>
    %258 = arith.addf %257, %256 : vector<64x1xf32>
    %259 = arith.divf %257, %258 : vector<64x1xf32>
    %c0_82 = arith.constant 0 : index
    %c0_83 = arith.constant 0 : index
    %260 = vector.load %arg8[%c0_82, %c0_83] : memref<64x1xf32, #tpu.memory_space<vmem>>, vector<64x1xf32>
    tpu.vector_store %arg8[%c0_82, %c0_83], %259 {strides = array<i32>} : memref<64x1xf32, #tpu.memory_space<vmem>>, vector<64x1xf32>,
    return
  }
}

</mosaic_0001>

<llo_original>
// kernel: tpu_custom_call.1
$region0: #{tpu_custom_call.1}
  #allocation0 [shape = 'u32[]', space=smem, size = 0x4, offset = 0x4, fixed_abs, tag = 'smem constant byte address 0x4 - core index']
  #allocation1 [shape = 'u32[144,128]{1,0:T(1,128)}', space=vmem, size = 0x12000, scoped, tag = 'internal scratch']
  #allocation2 [shape = 'f32[64,512]{1,0:T(8,128)}', space=vmem, size = 0x20000, scoped, tag = 'scratch operand']
  #allocation3 [shape = 'f32[64,128]{1,0:T(8,128)}', space=vmem, size = 0x8000, scoped, tag = 'scratch operand']
  #allocation4 [shape = 'f32[1,1]{1,0:T(1,128)S(1)}', space=vmem, size = 0x200, scoped, tag = 'scoped memory for tpu_custom_call.1']
  %s0 = inlined_call_operand.vmem [shape: f32[64,128], index: 0, kind: input, shape index: {}]
  %s1 = inlined_call_operand.hbm [shape: f32[128,512], index: 1, kind: input, shape index: {}]
  %s2 = inlined_call_operand.hbm [shape: f32[128,512], index: 2, kind: input, shape index: {}]
  %s3 = inlined_call_operand.vmem [shape: f32[1,512], index: 3, kind: input, shape index: {}]
  %s4 = inlined_call_operand.vmem [shape: f32[128,64], index: 4, kind: input, shape index: {}]
  %s5 = inlined_call_operand.vmem [shape: f32[1,64], index: 5, kind: input, shape index: {}]
  %s6 = inlined_call_operand.vmem [shape: f32[64,1], index: 6, kind: input, shape index: {}]
  %s7 = inlined_call_operand.<no memory space> [shape: f32[1,1], index: 7, kind: input, shape index: {}]
  %s8 = inlined_call_operand.vmem [shape: f32[64,1], index: 8, kind: output, shape index: {}]
  %s9 = sld [smem:[#allocation0]]
  $region50: #{tpu_custom_call.1} parent=0
    _
  %s11 = ssub.s32 1, %s9
  %s12 = scalar_select 0, %s11, %s9
  %v13 = vstv %s7
  %14 = vst [vmem:[#allocation4] sm:$0x1] %v13
  $region1: #{tpu_custom_call.1} parent=0
    #allocation5 [shape = 'u8[262144]{0}', space=vmem, size = 0x40000, scoped, tag = 'input window, operand 1, single buffered']
    #allocation6 [shape = 's32[1]{0}', space=sflag, size = 0x4, scoped, tag = 'scoped memory for tpu_custom_call.1']
    #allocation7 [shape = 'u8[262144]{0}', space=vmem, size = 0x40000, scoped, tag = 'input window, operand 2, single buffered']
    #allocation8 [shape = 's32[1]{0}', space=sflag, size = 0x4, scoped, tag = 'scoped memory for tpu_custom_call.1']
    %15 = vsyncpa [#allocation6], 0
    %16 = vsyncpa [#allocation8], 0
    // Predicated region
    $region2: #{tpu_custom_call.1} parent=1 // pred_check
      _
    $region3: #{tpu_custom_call.1} parent=1 // pred_check_branch
      %18 = sbr.rel (0) target = $region5
    $region4: #{tpu_custom_call.1} parent=1 // pred_region
      _
    $region5: #{tpu_custom_call.1} parent=1 // pred_fallthru
      _
    // Predicated region
    $region6: #{tpu_custom_call.1} parent=1 // pred_check
      _
    $region7: #{tpu_custom_call.1} parent=1 // pred_check_branch
      %20 = sbr.rel (0) target = $region9
    $region8: #{tpu_custom_call.1} parent=1 // pred_region
      %s22 = ssub.s32 8192, 8192
      %23 = vsyncadd [#allocation6], %s22
      %s24 = sshll.u32 [#allocation5], 4
      %s25 = int_to_ptr.vmem [resolvable:$true] %s24
      %30 = dma.hbm_to_vmem [thread:$0]  %s1, 8192, %s25, [#allocation6], 512, 512, 32
    $region9: #{tpu_custom_call.1} parent=1 // pred_fallthru
      _
    // Predicated region
    $region10: #{tpu_custom_call.1} parent=1 // pred_check
      _
    $region11: #{tpu_custom_call.1} parent=1 // pred_check_branch
      %32 = sbr.rel (0) target = $region13
    $region12: #{tpu_custom_call.1} parent=1 // pred_region
      %s34 = ssub.s32 8192, 8192
      %35 = vsyncadd [#allocation8], %s34
      %s36 = sshll.u32 [#allocation7], 4
      %s37 = int_to_ptr.vmem [resolvable:$true] %s36
      %42 = dma.hbm_to_vmem [thread:$0]  %s2, 8192, %s37, [#allocation8], 512, 512, 32
    $region13: #{tpu_custom_call.1} parent=1 // pred_fallthru
      _
    // Predicated region
    $region14: #{tpu_custom_call.1} parent=1 // pred_check
      _
    $region15: #{tpu_custom_call.1} parent=1 // pred_check_branch
      %44 = sbr.rel (0) target = $region17
    $region16: #{tpu_custom_call.1} parent=1 // pred_region
      _
    $region17: #{tpu_custom_call.1} parent=1 // pred_fallthru
      _
    // Predicated region
    $region18: #{tpu_custom_call.1} parent=1 // pred_check
      _
    $region19: #{tpu_custom_call.1} parent=1 // pred_check_branch
      %46 = sbr.rel (0) target = $region21
    $region20: #{tpu_custom_call.1} parent=1 // pred_region
      _
    $region21: #{tpu_custom_call.1} parent=1 // pred_fallthru
      _
    // Predicated region
    $region22: #{tpu_custom_call.1} parent=1 // pred_check
      _
    $region23: #{tpu_custom_call.1} parent=1 // pred_check_branch
      %48 = sbr.rel (0) target = $region25
    $region24: #{tpu_custom_call.1} parent=1 // pred_region
      _
    $region25: #{tpu_custom_call.1} parent=1 // pred_fallthru
      _
    // Predicated region
    $region26: #{tpu_custom_call.1} parent=1 // pred_check
      _
    $region27: #{tpu_custom_call.1} parent=1 // pred_check_branch
      %50 = sbr.rel (0) target = $region29
    $region28: #{tpu_custom_call.1} parent=1 // pred_region
      _
    $region29: #{tpu_custom_call.1} parent=1 // pred_fallthru
      _
    // Predicated region
    $region30: #{tpu_custom_call.1} parent=1 // pred_check
      _
    $region31: #{tpu_custom_call.1} parent=1 // pred_check_branch
      %52 = sbr.rel (0) target = $region33
    $region32: #{tpu_custom_call.1} parent=1 // pred_region
      _
    $region33: #{tpu_custom_call.1} parent=1 // pred_fallthru
      _
    // Predicated region
    $region34: #{tpu_custom_call.1} parent=1 // pred_check
      _
    $region35: #{tpu_custom_call.1} parent=1 // pred_check_branch
      %54 = sbr.rel (0) target = $region37
    $region36: #{tpu_custom_call.1} parent=1 // pred_region
      %55 = dma.done [#allocation6], 8192
    $region37: #{tpu_custom_call.1} parent=1 // pred_fallthru
      _
    // Predicated region
    $region38: #{tpu_custom_call.1} parent=1 // pred_check
      _
    $region39: #{tpu_custom_call.1} parent=1 // pred_check_branch
      %57 = sbr.rel (0) target = $region41
    $region40: #{tpu_custom_call.1} parent=1 // pred_region
      %58 = dma.done [#allocation8], 8192
    $region41: #{tpu_custom_call.1} parent=1 // pred_fallthru
      _
    %v59 = vld [vmem:[%s0] sm:$0xff]
    %v60 = vld [vmem:[%s0 + $0x8] sm:$0xff]
    %v61 = vld [vmem:[%s0 + $0x10] sm:$0xff]
    %v62 = vld [vmem:[%s0 + $0x18] sm:$0xff]
    %v63 = vld [vmem:[%s0 + $0x20] sm:$0xff]
    %v64 = vld [vmem:[%s0 + $0x28] sm:$0xff]
    %v65 = vld [vmem:[%s0 + $0x30] sm:$0xff]
    %v66 = vld [vmem:[%s0 + $0x38] sm:$0xff]
    %v67 = vld [vmem:[#allocation5] sm:$0xff]
    %v68 = vld [vmem:[#allocation5 + $0x8] sm:$0xff]
    %v69 = vld [vmem:[#allocation5 + $0x10] sm:$0xff]
    %v70 = vld [vmem:[#allocation5 + $0x18] sm:$0xff]
    %v71 = vld [vmem:[#allocation5 + $0x20] sm:$0xff]
    %v72 = vld [vmem:[#allocation5 + $0x28] sm:$0xff]
    %v73 = vld [vmem:[#allocation5 + $0x30] sm:$0xff]
    %v74 = vld [vmem:[#allocation5 + $0x38] sm:$0xff]
    %v75 = vld [vmem:[#allocation5 + $0x40] sm:$0xff]
    %v76 = vld [vmem:[#allocation5 + $0x48] sm:$0xff]
    %v77 = vld [vmem:[#allocation5 + $0x50] sm:$0xff]
    %v78 = vld [vmem:[#allocation5 + $0x58] sm:$0xff]
    %v79 = vld [vmem:[#allocation5 + $0x60] sm:$0xff]
    %v80 = vld [vmem:[#allocation5 + $0x68] sm:$0xff]
    %v81 = vld [vmem:[#allocation5 + $0x70] sm:$0xff]
    %v82 = vld [vmem:[#allocation5 + $0x78] sm:$0xff]
    %v83 = vld [vmem:[#allocation5 + $0x80] sm:$0xff]
    %v84 = vld [vmem:[#allocation5 + $0x88] sm:$0xff]
    %v85 = vld [vmem:[#allocation5 + $0x90] sm:$0xff]
    %v86 = vld [vmem:[#allocation5 + $0x98] sm:$0xff]
    %v87 = vld [vmem:[#allocation5 + $0xa0] sm:$0xff]
    %v88 = vld [vmem:[#allocation5 + $0xa8] sm:$0xff]
    %v89 = vld [vmem:[#allocation5 + $0xb0] sm:$0xff]
    %v90 = vld [vmem:[#allocation5 + $0xb8] sm:$0xff]
    %v91 = vld [vmem:[#allocation5 + $0xc0] sm:$0xff]
    %v92 = vld [vmem:[#allocation5 + $0xc8] sm:$0xff]
    %v93 = vld [vmem:[#allocation5 + $0xd0] sm:$0xff]
    %v94 = vld [vmem:[#allocation5 + $0xd8] sm:$0xff]
    %v95 = vld [vmem:[#allocation5 + $0xe0] sm:$0xff]
    %v96 = vld [vmem:[#allocation5 + $0xe8] sm:$0xff]
    %v97 = vld [vmem:[#allocation5 + $0xf0] sm:$0xff]
    %v98 = vld [vmem:[#allocation5 + $0xf8] sm:$0xff]
    %v99 = vld [vmem:[#allocation5 + $0x100] sm:$0xff]
    %v100 = vld [vmem:[#allocation5 + $0x108] sm:$0xff]
    %v101 = vld [vmem:[#allocation5 + $0x110] sm:$0xff]
    %v102 = vld [vmem:[#allocation5 + $0x118] sm:$0xff]
    %v103 = vld [vmem:[#allocation5 + $0x120] sm:$0xff]
    %v104 = vld [vmem:[#allocation5 + $0x128] sm:$0xff]
    %v105 = vld [vmem:[#allocation5 + $0x130] sm:$0xff]
    %v106 = vld [vmem:[#allocation5 + $0x138] sm:$0xff]
    %v107 = vld [vmem:[#allocation5 + $0x140] sm:$0xff]
    %v108 = vld [vmem:[#allocation5 + $0x148] sm:$0xff]
    %v109 = vld [vmem:[#allocation5 + $0x150] sm:$0xff]
    %v110 = vld [vmem:[#allocation5 + $0x158] sm:$0xff]
    %v111 = vld [vmem:[#allocation5 + $0x160] sm:$0xff]
    %v112 = vld [vmem:[#allocation5 + $0x168] sm:$0xff]
    %v113 = vld [vmem:[#allocation5 + $0x170] sm:$0xff]
    %v114 = vld [vmem:[#allocation5 + $0x178] sm:$0xff]
    %v115 = vld [vmem:[#allocation5 + $0x180] sm:$0xff]
    %v116 = vld [vmem:[#allocation5 + $0x188] sm:$0xff]
    %v117 = vld [vmem:[#allocation5 + $0x190] sm:$0xff]
    %v118 = vld [vmem:[#allocation5 + $0x198] sm:$0xff]
    %v119 = vld [vmem:[#allocation5 + $0x1a0] sm:$0xff]
    %v120 = vld [vmem:[#allocation5 + $0x1a8] sm:$0xff]
    %v121 = vld [vmem:[#allocation5 + $0x1b0] sm:$0xff]
    %v122 = vld [vmem:[#allocation5 + $0x1b8] sm:$0xff]
    %v123 = vld [vmem:[#allocation5 + $0x1c0] sm:$0xff]
    %v124 = vld [vmem:[#allocation5 + $0x1c8] sm:$0xff]
    %v125 = vld [vmem:[#allocation5 + $0x1d0] sm:$0xff]
    %v126 = vld [vmem:[#allocation5 + $0x1d8] sm:$0xff]
    %v127 = vld [vmem:[#allocation5 + $0x1e0] sm:$0xff]
    %v128 = vld [vmem:[#allocation5 + $0x1e8] sm:$0xff]
    %v129 = vld [vmem:[#allocation5 + $0x1f0] sm:$0xff]
    %v130 = vld [vmem:[#allocation5 + $0x1f8] sm:$0xff]
    %v131 = vld [vmem:[%s3] sm:$0xf]
    %v133 = vlaneseq
    %v134 = vshrl.u32 %v133, 7
    %v135 = vsub.s32 0, %v134
    %v136 = vrot.slane %v131, %v135
    %v137 = vlaneseq
    %v138 = vshrl.u32 %v137, 7
    %v139 = vsub.s32 1, %v138
    %v140 = vrot.slane %v131, %v139
    %v141 = vlaneseq
    %v142 = vshrl.u32 %v141, 7
    %v143 = vsub.s32 2, %v142
    %v144 = vrot.slane %v131, %v143
    %v145 = vlaneseq
    %v146 = vshrl.u32 %v145, 7
    %v147 = vsub.s32 3, %v146
    %v148 = vrot.slane %v131, %v147
    %153 = vmatprep.subr.mxu0 %v68
    %154 = vmatpush1.msra.mxu0 %v67
    %155 = vmatprep.subr.mxu0 %v72
    %156 = vmatpush1.msra.mxu0 %v71
    %157 = vmatprep.subr.mxu0 %v76
    %158 = vmatpush1.msra.mxu0 %v75
    %159 = vmatprep.subr.mxu0 %v80
    %160 = vmatpush1.msra.mxu0 %v79
    %161 = vmatprep.subr.mxu0 %v84
    %162 = vmatpush1.msra.mxu0 %v83
    %163 = vmatprep.subr.mxu0 %v88
    %164 = vmatpush1.msra.mxu0 %v87
    %165 = vmatprep.subr.mxu0 %v92
    %166 = vmatpush1.msra.mxu0 %v91
    %167 = vmatprep.subr.mxu0 %v96
    %168 = vmatpush1.msra.mxu0 %v95
    %169 = vmatprep.subr.mxu0 %v100
    %170 = vmatpush1.msra.mxu0 %v99
    %171 = vmatprep.subr.mxu0 %v104
    %172 = vmatpush1.msra.mxu0 %v103
    %173 = vmatprep.subr.mxu0 %v108
    %174 = vmatpush1.msra.mxu0 %v107
    %175 = vmatprep.subr.mxu0 %v112
    %176 = vmatpush1.msra.mxu0 %v111
    %177 = vmatprep.subr.mxu0 %v116
    %178 = vmatpush1.msra.mxu0 %v115
    %179 = vmatprep.subr.mxu0 %v120
    %180 = vmatpush1.msra.mxu0 %v119
    %181 = vmatprep.subr.mxu0 %v124
    %182 = vmatpush1.msra.mxu0 %v123
    %183 = vmatprep.subr.mxu0 %v128
    %184 = vmatpush1.msra.mxu0 %v127
    %185 = vmatprep.subr.mxu0 0.0
    %186 = vmatpush1.msra.mxu0 0.0
    %187 = vmatprep.subr.mxu0 0.0
    %188 = vmatpush1.msra.mxu0 0.0
    %189 = vmatprep.subr.mxu0 0.0
    %190 = vmatpush1.msra.mxu0 0.0
    %191 = vmatprep.subr.mxu0 0.0
    %192 = vmatpush1.msra.mxu0 0.0
    %193 = vmatprep.subr.mxu0 0.0
    %194 = vmatpush1.msra.mxu0 0.0
    %195 = vmatprep.subr.mxu0 0.0
    %196 = vmatpush1.msra.mxu0 0.0
    %197 = vmatprep.subr.mxu0 0.0
    %198 = vmatpush1.msra.mxu0 0.0
    %199 = vmatprep.subr.mxu0 0.0
    %200 = vmatpush1.msra.mxu0 0.0
    %201 = vmatprep.subr.mxu0 0.0
    %202 = vmatpush1.msra.mxu0 0.0
    %203 = vmatprep.subr.mxu0 0.0
    %204 = vmatpush1.msra.mxu0 0.0
    %205 = vmatprep.subr.mxu0 0.0
    %206 = vmatpush1.msra.mxu0 0.0
    %207 = vmatprep.subr.mxu0 0.0
    %208 = vmatpush1.msra.mxu0 0.0
    %209 = vmatprep.subr.mxu0 0.0
    %210 = vmatpush1.msra.mxu0 0.0
    %211 = vmatprep.subr.mxu0 0.0
    %212 = vmatpush1.msra.mxu0 0.0
    %213 = vmatprep.subr.mxu0 0.0
    %214 = vmatpush1.msra.mxu0 0.0
    %215 = vmatprep.subr.mxu0 0.0
    %216 = vmatpush1.msra.mxu0 0.0
    %217 = vmatprep.mubr.f32.mxu0 0.0
    %218 = vmatmul.mubr.f32.gmra.mrb[0].mxu0 %v59
    %v219 = vpop.f32.mrb[0].mxu0
    %v220 = vadd.f32 %v136, %v219
    %v221 = vpop.f32.mrb[0].mxu0
    %v222 = vadd.f32 %v140, %v221
    %223 = vmatprep.mubr.f32.mxu0 0.0
    %224 = vmatmul.mubr.f32.gmra.mrb[0].mxu0 %v60
    %v225 = vpop.f32.mrb[0].mxu0
    %v226 = vadd.f32 %v136, %v225
    %v227 = vpop.f32.mrb[0].mxu0
    %v228 = vadd.f32 %v140, %v227
    %229 = vmatprep.mubr.f32.mxu0 0.0
    %230 = vmatmul.mubr.f32.gmra.mrb[0].mxu0 %v61
    %v231 = vpop.f32.mrb[0].mxu0
    %v232 = vadd.f32 %v136, %v231
    %v233 = vpop.f32.mrb[0].mxu0
    %v234 = vadd.f32 %v140, %v233
    %235 = vmatprep.mubr.f32.mxu0 0.0
    %236 = vmatmul.mubr.f32.gmra.mrb[0].mxu0 %v62
    %v237 = vpop.f32.mrb[0].mxu0
    %v238 = vadd.f32 %v136, %v237
    %v239 = vpop.f32.mrb[0].mxu0
    %v240 = vadd.f32 %v140, %v239
    %241 = vmatprep.mubr.f32.mxu0 0.0
    %242 = vmatmul.mubr.f32.gmra.mrb[0].mxu0 %v63
    %v243 = vpop.f32.mrb[0].mxu0
    %v244 = vadd.f32 %v136, %v243
    %v245 = vpop.f32.mrb[0].mxu0
    %v246 = vadd.f32 %v140, %v245
    %247 = vmatprep.mubr.f32.mxu0 0.0
    %248 = vmatmul.mubr.f32.gmra.mrb[0].mxu0 %v64
    %v249 = vpop.f32.mrb[0].mxu0
    %v250 = vadd.f32 %v136, %v249
    %v251 = vpop.f32.mrb[0].mxu0
    %v252 = vadd.f32 %v140, %v251
    %253 = vmatprep.mubr.f32.mxu0 0.0
    %254 = vmatmul.mubr.f32.gmra.mrb[0].mxu0 %v65
    %v255 = vpop.f32.mrb[0].mxu0
    %v256 = vadd.f32 %v136, %v255
    %v257 = vpop.f32.mrb[0].mxu0
    %v258 = vadd.f32 %v140, %v257
    %259 = vmatprep.mubr.f32.mxu0 0.0
    %260 = vmatmul.mubr.f32.gmra.mrb[0].mxu0 %v66
    %v261 = vpop.f32.mrb[0].mxu0
    %v262 = vadd.f32 %v136, %v261
    %v263 = vpop.f32.mrb[0].mxu0
    %v264 = vadd.f32 %v140, %v263
    %265 = vdwg.mxu0
    %266 = vmatprep.subr.mxu0 %v70
    %267 = vmatpush1.msra.mxu0 %v69
    %268 = vmatprep.subr.mxu0 %v74
    %269 = vmatpush1.msra.mxu0 %v73
    %270 = vmatprep.subr.mxu0 %v78
    %271 = vmatpush1.msra.mxu0 %v77
    %272 = vmatprep.subr.mxu0 %v82
    %273 = vmatpush1.msra.mxu0 %v81
    %274 = vmatprep.subr.mxu0 %v86
    %275 = vmatpush1.msra.mxu0 %v85
    %276 = vmatprep.subr.mxu0 %v90
    %277 = vmatpush1.msra.mxu0 %v89
    %278 = vmatprep.subr.mxu0 %v94
    %279 = vmatpush1.msra.mxu0 %v93
    %280 = vmatprep.subr.mxu0 %v98
    %281 = vmatpush1.msra.mxu0 %v97
    %282 = vmatprep.subr.mxu0 %v102
    %283 = vmatpush1.msra.mxu0 %v101
    %284 = vmatprep.subr.mxu0 %v106
    %285 = vmatpush1.msra.mxu0 %v105
    %286 = vmatprep.subr.mxu0 %v110
    %287 = vmatpush1.msra.mxu0 %v109
    %288 = vmatprep.subr.mxu0 %v114
    %289 = vmatpush1.msra.mxu0 %v113
    %290 = vmatprep.subr.mxu0 %v118
    %291 = vmatpush1.msra.mxu0 %v117
    %292 = vmatprep.subr.mxu0 %v122
    %293 = vmatpush1.msra.mxu0 %v121
    %294 = vmatprep.subr.mxu0 %v126
    %295 = vmatpush1.msra.mxu0 %v125
    %296 = vmatprep.subr.mxu0 %v130
    %297 = vmatpush1.msra.mxu0 %v129
    %298 = vmatprep.subr.mxu0 0.0
    %299 = vmatpush1.msra.mxu0 0.0
    %300 = vmatprep.subr.mxu0 0.0
    %301 = vmatpush1.msra.mxu0 0.0
    %302 = vmatprep.subr.mxu0 0.0
    %303 = vmatpush1.msra.mxu0 0.0
    %304 = vmatprep.subr.mxu0 0.0
    %305 = vmatpush1.msra.mxu0 0.0
    %306 = vmatprep.subr.mxu0 0.0
    %307 = vmatpush1.msra.mxu0 0.0
    %308 = vmatprep.subr.mxu0 0.0
    %309 = vmatpush1.msra.mxu0 0.0
    %310 = vmatprep.subr.mxu0 0.0
    %311 = vmatpush1.msra.mxu0 0.0
    %312 = vmatprep.subr.mxu0 0.0
    %313 = vmatpush1.msra.mxu0 0.0
    %314 = vmatprep.subr.mxu0 0.0
    %315 = vmatpush1.msra.mxu0 0.0
    %316 = vmatprep.subr.mxu0 0.0
    %317 = vmatpush1.msra.mxu0 0.0
    %318 = vmatprep.subr.mxu0 0.0
    %319 = vmatpush1.msra.mxu0 0.0
    %320 = vmatprep.subr.mxu0 0.0
    %321 = vmatpush1.msra.mxu0 0.0
    %322 = vmatprep.subr.mxu0 0.0
    %323 = vmatpush1.msra.mxu0 0.0
    %324 = vmatprep.subr.mxu0 0.0
    %325 = vmatpush1.msra.mxu0 0.0
    %326 = vmatprep.subr.mxu0 0.0
    %327 = vmatpush1.msra.mxu0 0.0
    %328 = vmatprep.subr.mxu0 0.0
    %329 = vmatpush1.msra.mxu0 0.0
    %330 = vmatprep.mubr.f32.mxu0 0.0
    %331 = vmatmul.mubr.f32.gmra.mrb[0].mxu0 %v59
    %v332 = vpop.f32.mrb[0].mxu0
    %v333 = vadd.f32 %v144, %v332
    %v334 = vpop.f32.mrb[0].mxu0
    %v335 = vadd.f32 %v148, %v334
    %336 = vmatprep.mubr.f32.mxu0 0.0
    %337 = vmatmul.mubr.f32.gmra.mrb[0].mxu0 %v60
    %v338 = vpop.f32.mrb[0].mxu0
    %v339 = vadd.f32 %v144, %v338
    %v340 = vpop.f32.mrb[0].mxu0
    %v341 = vadd.f32 %v148, %v340
    %342 = vmatprep.mubr.f32.mxu0 0.0
    %343 = vmatmul.mubr.f32.gmra.mrb[0].mxu0 %v61
    %v344 = vpop.f32.mrb[0].mxu0
    %v345 = vadd.f32 %v144, %v344
    %v346 = vpop.f32.mrb[0].mxu0
    %v347 = vadd.f32 %v148, %v346
    %348 = vmatprep.mubr.f32.mxu0 0.0
    %349 = vmatmul.mubr.f32.gmra.mrb[0].mxu0 %v62
    %v350 = vpop.f32.mrb[0].mxu0
    %v351 = vadd.f32 %v144, %v350
    %v352 = vpop.f32.mrb[0].mxu0
    %v353 = vadd.f32 %v148, %v352
    %354 = vmatprep.mubr.f32.mxu0 0.0
    %355 = vmatmul.mubr.f32.gmra.mrb[0].mxu0 %v63
    %v356 = vpop.f32.mrb[0].mxu0
    %v357 = vadd.f32 %v144, %v356
    %v358 = vpop.f32.mrb[0].mxu0
    %v359 = vadd.f32 %v148, %v358
    %360 = vmatprep.mubr.f32.mxu0 0.0
    %361 = vmatmul.mubr.f32.gmra.mrb[0].mxu0 %v64
    %v362 = vpop.f32.mrb[0].mxu0
    %v363 = vadd.f32 %v144, %v362
    %v364 = vpop.f32.mrb[0].mxu0
    %v365 = vadd.f32 %v148, %v364
    %366 = vmatprep.mubr.f32.mxu0 0.0
    %367 = vmatmul.mubr.f32.gmra.mrb[0].mxu0 %v65
    %v368 = vpop.f32.mrb[0].mxu0
    %v369 = vadd.f32 %v144, %v368
    %v370 = vpop.f32.mrb[0].mxu0
    %v371 = vadd.f32 %v148, %v370
    %372 = vmatprep.mubr.f32.mxu0 0.0
    %373 = vmatmul.mubr.f32.gmra.mrb[0].mxu0 %v66
    %v374 = vpop.f32.mrb[0].mxu0
    %v375 = vadd.f32 %v144, %v374
    %v376 = vpop.f32.mrb[0].mxu0
    %v377 = vadd.f32 %v148, %v376
    %378 = vdwg.mxu0
    %379 = vst [vmem:[#allocation2] sm:$0xff] %v220
    %380 = vst [vmem:[#allocation2 + $0x8] sm:$0xff] %v222
    %381 = vst [vmem:[#allocation2 + $0x10] sm:$0xff] %v333
    %382 = vst [vmem:[#allocation2 + $0x18] sm:$0xff] %v335
    %383 = vst [vmem:[#allocation2 + $0x20] sm:$0xff] %v226
    %384 = vst [vmem:[#allocation2 + $0x28] sm:$0xff] %v228
    %385 = vst [vmem:[#allocation2 + $0x30] sm:$0xff] %v339
    %386 = vst [vmem:[#allocation2 + $0x38] sm:$0xff] %v341
    %387 = vst [vmem:[#allocation2 + $0x40] sm:$0xff] %v232
    %388 = vst [vmem:[#allocation2 + $0x48] sm:$0xff] %v234
    %389 = vst [vmem:[#allocation2 + $0x50] sm:$0xff] %v345
    %390 = vst [vmem:[#allocation2 + $0x58] sm:$0xff] %v347
    %391 = vst [vmem:[#allocation2 + $0x60] sm:$0xff] %v238
    %392 = vst [vmem:[#allocation2 + $0x68] sm:$0xff] %v240
    %393 = vst [vmem:[#allocation2 + $0x70] sm:$0xff] %v351
    %394 = vst [vmem:[#allocation2 + $0x78] sm:$0xff] %v353
    %395 = vst [vmem:[#allocation2 + $0x80] sm:$0xff] %v244
    %396 = vst [vmem:[#allocation2 + $0x88] sm:$0xff] %v246
    %397 = vst [vmem:[#allocation2 + $0x90] sm:$0xff] %v357
    %398 = vst [vmem:[#allocation2 + $0x98] sm:$0xff] %v359
    %399 = vst [vmem:[#allocation2 + $0xa0] sm:$0xff] %v250
    %400 = vst [vmem:[#allocation2 + $0xa8] sm:$0xff] %v252
    %401 = vst [vmem:[#allocation2 + $0xb0] sm:$0xff] %v363
    %402 = vst [vmem:[#allocation2 + $0xb8] sm:$0xff] %v365
    %403 = vst [vmem:[#allocation2 + $0xc0] sm:$0xff] %v256
    %404 = vst [vmem:[#allocation2 + $0xc8] sm:$0xff] %v258
    %405 = vst [vmem:[#allocation2 + $0xd0] sm:$0xff] %v369
    %406 = vst [vmem:[#allocation2 + $0xd8] sm:$0xff] %v371
    %407 = vst [vmem:[#allocation2 + $0xe0] sm:$0xff] %v262
    %408 = vst [vmem:[#allocation2 + $0xe8] sm:$0xff] %v264
    %409 = vst [vmem:[#allocation2 + $0xf0] sm:$0xff] %v375
    %410 = vst [vmem:[#allocation2 + $0xf8] sm:$0xff] %v377
    %v411 = vld [vmem:[#allocation7] sm:$0xff]
    %v412 = vld [vmem:[#allocation7 + $0x8] sm:$0xff]
    %v413 = vld [vmem:[#allocation7 + $0x10] sm:$0xff]
    %v414 = vld [vmem:[#allocation7 + $0x18] sm:$0xff]
    %v415 = vld [vmem:[#allocation7 + $0x20] sm:$0xff]
    %v416 = vld [vmem:[#allocation7 + $0x28] sm:$0xff]
    %v417 = vld [vmem:[#allocation7 + $0x30] sm:$0xff]
    %v418 = vld [vmem:[#allocation7 + $0x38] sm:$0xff]
    %v419 = vld [vmem:[#allocation7 + $0x40] sm:$0xff]
    %v420 = vld [vmem:[#allocation7 + $0x48] sm:$0xff]
    %v421 = vld [vmem:[#allocation7 + $0x50] sm:$0xff]
    %v422 = vld [vmem:[#allocation7 + $0x58] sm:$0xff]
    %v423 = vld [vmem:[#allocation7 + $0x60] sm:$0xff]
    %v424 = vld [vmem:[#allocation7 + $0x68] sm:$0xff]
    %v425 = vld [vmem:[#allocation7 + $0x70] sm:$0xff]
    %v426 = vld [vmem:[#allocation7 + $0x78] sm:$0xff]
    %v427 = vld [vmem:[#allocation7 + $0x80] sm:$0xff]
    %v428 = vld [vmem:[#allocation7 + $0x88] sm:$0xff]
    %v429 = vld [vmem:[#allocation7 + $0x90] sm:$0xff]
    %v430 = vld [vmem:[#allocation7 + $0x98] sm:$0xff]
    %v431 = vld [vmem:[#allocation7 + $0xa0] sm:$0xff]
    %v432 = vld [vmem:[#allocation7 + $0xa8] sm:$0xff]
    %v433 = vld [vmem:[#allocation7 + $0xb0] sm:$0xff]
    %v434 = vld [vmem:[#allocation7 + $0xb8] sm:$0xff]
    %v435 = vld [vmem:[#allocation7 + $0xc0] sm:$0xff]
    %v436 = vld [vmem:[#allocation7 + $0xc8] sm:$0xff]
    %v437 = vld [vmem:[#allocation7 + $0xd0] sm:$0xff]
    %v438 = vld [vmem:[#allocation7 + $0xd8] sm:$0xff]
    %v439 = vld [vmem:[#allocation7 + $0xe0] sm:$0xff]
    %v440 = vld [vmem:[#allocation7 + $0xe8] sm:$0xff]
    %v441 = vld [vmem:[#allocation7 + $0xf0] sm:$0xff]
    %v442 = vld [vmem:[#allocation7 + $0xf8] sm:$0xff]
    %v443 = vld [vmem:[#allocation7 + $0x100] sm:$0xff]
    %v444 = vld [vmem:[#allocation7 + $0x108] sm:$0xff]
    %v445 = vld [vmem:[#allocation7 + $0x110] sm:$0xff]
    %v446 = vld [vmem:[#allocation7 + $0x118] sm:$0xff]
    %v447 = vld [vmem:[#allocation7 + $0x120] sm:$0xff]
    %v448 = vld [vmem:[#allocation7 + $0x128] sm:$0xff]
    %v449 = vld [vmem:[#allocation7 + $0x130] sm:$0xff]
    %v450 = vld [vmem:[#allocation7 + $0x138] sm:$0xff]
    %v451 = vld [vmem:[#allocation7 + $0x140] sm:$0xff]
    %v452 = vld [vmem:[#allocation7 + $0x148] sm:$0xff]
    %v453 = vld [vmem:[#allocation7 + $0x150] sm:$0xff]
    %v454 = vld [vmem:[#allocation7 + $0x158] sm:$0xff]
    %v455 = vld [vmem:[#allocation7 + $0x160] sm:$0xff]
    %v456 = vld [vmem:[#allocation7 + $0x168] sm:$0xff]
    %v457 = vld [vmem:[#allocation7 + $0x170] sm:$0xff]
    %v458 = vld [vmem:[#allocation7 + $0x178] sm:$0xff]
    %v459 = vld [vmem:[#allocation7 + $0x180] sm:$0xff]
    %v460 = vld [vmem:[#allocation7 + $0x188] sm:$0xff]
    %v461 = vld [vmem:[#allocation7 + $0x190] sm:$0xff]
    %v462 = vld [vmem:[#allocation7 + $0x198] sm:$0xff]
    %v463 = vld [vmem:[#allocation7 + $0x1a0] sm:$0xff]
    %v464 = vld [vmem:[#allocation7 + $0x1a8] sm:$0xff]
    %v465 = vld [vmem:[#allocation7 + $0x1b0] sm:$0xff]
    %v466 = vld [vmem:[#allocation7 + $0x1b8] sm:$0xff]
    %v467 = vld [vmem:[#allocation7 + $0x1c0] sm:$0xff]
    %v468 = vld [vmem:[#allocation7 + $0x1c8] sm:$0xff]
    %v469 = vld [vmem:[#allocation7 + $0x1d0] sm:$0xff]
    %v470 = vld [vmem:[#allocation7 + $0x1d8] sm:$0xff]
    %v471 = vld [vmem:[#allocation7 + $0x1e0] sm:$0xff]
    %v472 = vld [vmem:[#allocation7 + $0x1e8] sm:$0xff]
    %v473 = vld [vmem:[#allocation7 + $0x1f0] sm:$0xff]
    %v474 = vld [vmem:[#allocation7 + $0x1f8] sm:$0xff]
    %v475 = vld [vmem:[#allocation2] sm:$0xff]
    %v476 = vld [vmem:[#allocation2 + $0x8] sm:$0xff]
    %v477 = vld [vmem:[#allocation2 + $0x10] sm:$0xff]
    %v478 = vld [vmem:[#allocation2 + $0x18] sm:$0xff]
    %479 = vmatprep.subr.mxu0 %v412
    %480 = vmatpush1.msra.mxu0 %v411
    %481 = vmatprep.subr.mxu0 %v416
    %482 = vmatpush1.msra.mxu0 %v415
    %483 = vmatprep.subr.mxu0 %v420
    %484 = vmatpush1.msra.mxu0 %v419
    %485 = vmatprep.subr.mxu0 %v424
    %486 = vmatpush1.msra.mxu0 %v423
    %487 = vmatprep.subr.mxu0 %v428
    %488 = vmatpush1.msra.mxu0 %v427
    %489 = vmatprep.subr.mxu0 %v432
    %490 = vmatpush1.msra.mxu0 %v431
    %491 = vmatprep.subr.mxu0 %v436
    %492 = vmatpush1.msra.mxu0 %v435
    %493 = vmatprep.subr.mxu0 %v440
    %494 = vmatpush1.msra.mxu0 %v439
    %495 = vmatprep.subr.mxu0 %v444
    %496 = vmatpush1.msra.mxu0 %v443
    %497 = vmatprep.subr.mxu0 %v448
    %498 = vmatpush1.msra.mxu0 %v447
    %499 = vmatprep.subr.mxu0 %v452
    %500 = vmatpush1.msra.mxu0 %v451
    %501 = vmatprep.subr.mxu0 %v456
    %502 = vmatpush1.msra.mxu0 %v455
    %503 = vmatprep.subr.mxu0 %v460
    %504 = vmatpush1.msra.mxu0 %v459
    %505 = vmatprep.subr.mxu0 %v464
    %506 = vmatpush1.msra.mxu0 %v463
    %507 = vmatprep.subr.mxu0 %v468
    %508 = vmatpush1.msra.mxu0 %v467
    %509 = vmatprep.subr.mxu0 %v472
    %510 = vmatpush1.msra.mxu0 %v471
    %511 = vmatprep.subr.mxu0 0.0
    %512 = vmatpush1.msra.mxu0 0.0
    %513 = vmatprep.subr.mxu0 0.0
    %514 = vmatpush1.msra.mxu0 0.0
    %515 = vmatprep.subr.mxu0 0.0
    %516 = vmatpush1.msra.mxu0 0.0
    %517 = vmatprep.subr.mxu0 0.0
    %518 = vmatpush1.msra.mxu0 0.0
    %519 = vmatprep.subr.mxu0 0.0
    %520 = vmatpush1.msra.mxu0 0.0
    %521 = vmatprep.subr.mxu0 0.0
    %522 = vmatpush1.msra.mxu0 0.0
    %523 = vmatprep.subr.mxu0 0.0
    %524 = vmatpush1.msra.mxu0 0.0
    %525 = vmatprep.subr.mxu0 0.0
    %526 = vmatpush1.msra.mxu0 0.0
    %527 = vmatprep.subr.mxu0 0.0
    %528 = vmatpush1.msra.mxu0 0.0
    %529 = vmatprep.subr.mxu0 0.0
    %530 = vmatpush1.msra.mxu0 0.0
    %531 = vmatprep.subr.mxu0 0.0
    %532 = vmatpush1.msra.mxu0 0.0
    %533 = vmatprep.subr.mxu0 0.0
    %534 = vmatpush1.msra.mxu0 0.0
    %535 = vmatprep.subr.mxu0 0.0
    %536 = vmatpush1.msra.mxu0 0.0
    %537 = vmatprep.subr.mxu0 0.0
    %538 = vmatpush1.msra.mxu0 0.0
    %539 = vmatprep.subr.mxu0 0.0
    %540 = vmatpush1.msra.mxu0 0.0
    %541 = vmatprep.subr.mxu0 0.0
    %542 = vmatpush1.msra.mxu0 0.0
    %543 = vmatprep.mubr.f32.mxu0 0.0
    %544 = vmatmul.mubr.f32.gmra.mrb[0].mxu0 0.0
    %v545 = vpop.f32.mrb[0].mxu0
    %v546 = vadd.f32 0.0, %v545
    %v547 = vpop.f32.mrb[0].mxu0
    %v548 = vadd.f32 0.0, %v547
    %549 = vdwg.mxu0
    %550 = vmatprep.subr.mxu0 %v414
    %551 = vmatpush1.msra.mxu0 %v413
    %552 = vmatprep.subr.mxu0 %v418
    %553 = vmatpush1.msra.mxu0 %v417
    %554 = vmatprep.subr.mxu0 %v422
    %555 = vmatpush1.msra.mxu0 %v421
    %556 = vmatprep.subr.mxu0 %v426
    %557 = vmatpush1.msra.mxu0 %v425
    %558 = vmatprep.subr.mxu0 %v430
    %559 = vmatpush1.msra.mxu0 %v429
    %560 = vmatprep.subr.mxu0 %v434
    %561 = vmatpush1.msra.mxu0 %v433
    %562 = vmatprep.subr.mxu0 %v438
    %563 = vmatpush1.msra.mxu0 %v437
    %564 = vmatprep.subr.mxu0 %v442
    %565 = vmatpush1.msra.mxu0 %v441
    %566 = vmatprep.subr.mxu0 %v446
    %567 = vmatpush1.msra.mxu0 %v445
    %568 = vmatprep.subr.mxu0 %v450
    %569 = vmatpush1.msra.mxu0 %v449
    %570 = vmatprep.subr.mxu0 %v454
    %571 = vmatpush1.msra.mxu0 %v453
    %572 = vmatprep.subr.mxu0 %v458
    %573 = vmatpush1.msra.mxu0 %v457
    %574 = vmatprep.subr.mxu0 %v462
    %575 = vmatpush1.msra.mxu0 %v461
    %576 = vmatprep.subr.mxu0 %v466
    %577 = vmatpush1.msra.mxu0 %v465
    %578 = vmatprep.subr.mxu0 %v470
    %579 = vmatpush1.msra.mxu0 %v469
    %580 = vmatprep.subr.mxu0 %v474
    %581 = vmatpush1.msra.mxu0 %v473
    %582 = vmatprep.subr.mxu0 0.0
    %583 = vmatpush1.msra.mxu0 0.0
    %584 = vmatprep.subr.mxu0 0.0
    %585 = vmatpush1.msra.mxu0 0.0
    %586 = vmatprep.subr.mxu0 0.0
    %587 = vmatpush1.msra.mxu0 0.0
    %588 = vmatprep.subr.mxu0 0.0
    %589 = vmatpush1.msra.mxu0 0.0
    %590 = vmatprep.subr.mxu0 0.0
    %591 = vmatpush1.msra.mxu0 0.0
    %592 = vmatprep.subr.mxu0 0.0
    %593 = vmatpush1.msra.mxu0 0.0
    %594 = vmatprep.subr.mxu0 0.0
    %595 = vmatpush1.msra.mxu0 0.0
    %596 = vmatprep.subr.mxu0 0.0
    %597 = vmatpush1.msra.mxu0 0.0
    %598 = vmatprep.subr.mxu0 0.0
    %599 = vmatpush1.msra.mxu0 0.0
    %600 = vmatprep.subr.mxu0 0.0
    %601 = vmatpush1.msra.mxu0 0.0
    %602 = vmatprep.subr.mxu0 0.0
    %603 = vmatpush1.msra.mxu0 0.0
    %604 = vmatprep.subr.mxu0 0.0
    %605 = vmatpush1.msra.mxu0 0.0
    %606 = vmatprep.subr.mxu0 0.0
    %607 = vmatpush1.msra.mxu0 0.0
    %608 = vmatprep.subr.mxu0 0.0
    %609 = vmatpush1.msra.mxu0 0.0
    %610 = vmatprep.subr.mxu0 0.0
    %611 = vmatpush1.msra.mxu0 0.0
    %612 = vmatprep.subr.mxu0 0.0
    %613 = vmatpush1.msra.mxu0 0.0
    %614 = vmatprep.mubr.f32.mxu0 0.0
    %615 = vmatmul.mubr.f32.gmra.mrb[0].mxu0 0.0
    %v616 = vpop.f32.mrb[0].mxu0
    %v617 = vadd.f32 0.0, %v616
    %v618 = vpop.f32.mrb[0].mxu0
    %v619 = vadd.f32 0.0, %v618
    %620 = vdwg.mxu0
    %v621 = vadd.f32 %v475, %v546
    %v622 = vadd.f32 %v476, %v548
    %v623 = vadd.f32 %v477, %v617
    %v624 = vadd.f32 %v478, %v619
    %v625 = vxor.u32 %v621, 2147483648
    %v626 = vmul.f32 %v625, 1.442695
    %v627 = vpow.pop %v626
    %v628 = vadd.f32 %v627, 1.0
    %v629 = vrcp.pop %v628
    %v630 = vmul.f32 1.0, %v629
    %v631 = vxor.u32 %v622, 2147483648
    %v632 = vmul.f32 %v631, 1.442695
    %v633 = vpow.pop %v632
    %v634 = vadd.f32 %v633, 1.0
    %v635 = vrcp.pop %v634
    %v636 = vmul.f32 1.0, %v635
    %v637 = vtanh.pop %v623
    %v638 = vxor.u32 %v624, 2147483648
    %v639 = vmul.f32 %v638, 1.442695
    %v640 = vpow.pop %v639
    %v641 = vadd.f32 %v640, 1.0
    %v642 = vrcp.pop %v641
    %v643 = vmul.f32 1.0, %v642
    %v644 = vmul.f32 %v636, 0.0
    %v645 = vmul.f32 %v630, %v637
    %v646 = vadd.f32 %v644, %v645
    %v647 = vtanh.pop %v646
    %v648 = vmul.f32 %v643, %v647
    %649 = vst [vmem:[#allocation3] sm:$0xff] %v648
    %v650 = vld [vmem:[#allocation2 + $0x20] sm:$0xff]
    %v651 = vld [vmem:[#allocation2 + $0x28] sm:$0xff]
    %v652 = vld [vmem:[#allocation2 + $0x30] sm:$0xff]
    %v653 = vld [vmem:[#allocation2 + $0x38] sm:$0xff]
    %654 = vmatprep.subr.mxu0 %v412
    %655 = vmatpush1.msra.mxu0 %v411
    %656 = vmatprep.subr.mxu0 %v416
    %657 = vmatpush1.msra.mxu0 %v415
    %658 = vmatprep.subr.mxu0 %v420
    %659 = vmatpush1.msra.mxu0 %v419
    %660 = vmatprep.subr.mxu0 %v424
    %661 = vmatpush1.msra.mxu0 %v423
    %662 = vmatprep.subr.mxu0 %v428
    %663 = vmatpush1.msra.mxu0 %v427
    %664 = vmatprep.subr.mxu0 %v432
    %665 = vmatpush1.msra.mxu0 %v431
    %666 = vmatprep.subr.mxu0 %v436
    %667 = vmatpush1.msra.mxu0 %v435
    %668 = vmatprep.subr.mxu0 %v440
    %669 = vmatpush1.msra.mxu0 %v439
    %670 = vmatprep.subr.mxu0 %v444
    %671 = vmatpush1.msra.mxu0 %v443
    %672 = vmatprep.subr.mxu0 %v448
    %673 = vmatpush1.msra.mxu0 %v447
    %674 = vmatprep.subr.mxu0 %v452
    %675 = vmatpush1.msra.mxu0 %v451
    %676 = vmatprep.subr.mxu0 %v456
    %677 = vmatpush1.msra.mxu0 %v455
    %678 = vmatprep.subr.mxu0 %v460
    %679 = vmatpush1.msra.mxu0 %v459
    %680 = vmatprep.subr.mxu0 %v464
    %681 = vmatpush1.msra.mxu0 %v463
    %682 = vmatprep.subr.mxu0 %v468
    %683 = vmatpush1.msra.mxu0 %v467
    %684 = vmatprep.subr.mxu0 %v472
    %685 = vmatpush1.msra.mxu0 %v471
    %686 = vmatprep.subr.mxu0 0.0
    %687 = vmatpush1.msra.mxu0 0.0
    %688 = vmatprep.subr.mxu0 0.0
    %689 = vmatpush1.msra.mxu0 0.0
    %690 = vmatprep.subr.mxu0 0.0
    %691 = vmatpush1.msra.mxu0 0.0
    %692 = vmatprep.subr.mxu0 0.0
    %693 = vmatpush1.msra.mxu0 0.0
    %694 = vmatprep.subr.mxu0 0.0
    %695 = vmatpush1.msra.mxu0 0.0
    %696 = vmatprep.subr.mxu0 0.0
    %697 = vmatpush1.msra.mxu0 0.0
    %698 = vmatprep.subr.mxu0 0.0
    %699 = vmatpush1.msra.mxu0 0.0
    %700 = vmatprep.subr.mxu0 0.0
    %701 = vmatpush1.msra.mxu0 0.0
    %702 = vmatprep.subr.mxu0 0.0
    %703 = vmatpush1.msra.mxu0 0.0
    %704 = vmatprep.subr.mxu0 0.0
    %705 = vmatpush1.msra.mxu0 0.0
    %706 = vmatprep.subr.mxu0 0.0
    %707 = vmatpush1.msra.mxu0 0.0
    %708 = vmatprep.subr.mxu0 0.0
    %709 = vmatpush1.msra.mxu0 0.0
    %710 = vmatprep.subr.mxu0 0.0
    %711 = vmatpush1.msra.mxu0 0.0
    %712 = vmatprep.subr.mxu0 0.0
    %713 = vmatpush1.msra.mxu0 0.0
    %714 = vmatprep.subr.mxu0 0.0
    %715 = vmatpush1.msra.mxu0 0.0
    %716 = vmatprep.subr.mxu0 0.0
    %717 = vmatpush1.msra.mxu0 0.0
    %718 = vmatprep.mubr.f32.mxu0 0.0
    %719 = vmatmul.mubr.f32.gmra.mrb[0].mxu0 %v648
    %v720 = vpop.f32.mrb[0].mxu0
    %v721 = vadd.f32 0.0, %v720
    %v722 = vpop.f32.mrb[0].mxu0
    %v723 = vadd.f32 0.0, %v722
    %724 = vdwg.mxu0
    %725 = vmatprep.subr.mxu0 %v414
    %726 = vmatpush1.msra.mxu0 %v413
    %727 = vmatprep.subr.mxu0 %v418
    %728 = vmatpush1.msra.mxu0 %v417
    %729 = vmatprep.subr.mxu0 %v422
    %730 = vmatpush1.msra.mxu0 %v421
    %731 = vmatprep.subr.mxu0 %v426
    %732 = vmatpush1.msra.mxu0 %v425
    %733 = vmatprep.subr.mxu0 %v430
    %734 = vmatpush1.msra.mxu0 %v429
    %735 = vmatprep.subr.mxu0 %v434
    %736 = vmatpush1.msra.mxu0 %v433
    %737 = vmatprep.subr.mxu0 %v438
    %738 = vmatpush1.msra.mxu0 %v437
    %739 = vmatprep.subr.mxu0 %v442
    %740 = vmatpush1.msra.mxu0 %v441
    %741 = vmatprep.subr.mxu0 %v446
    %742 = vmatpush1.msra.mxu0 %v445
    %743 = vmatprep.subr.mxu0 %v450
    %744 = vmatpush1.msra.mxu0 %v449
    %745 = vmatprep.subr.mxu0 %v454
    %746 = vmatpush1.msra.mxu0 %v453
    %747 = vmatprep.subr.mxu0 %v458
    %748 = vmatpush1.msra.mxu0 %v457
    %749 = vmatprep.subr.mxu0 %v462
    %750 = vmatpush1.msra.mxu0 %v461
    %751 = vmatprep.subr.mxu0 %v466
    %752 = vmatpush1.msra.mxu0 %v465
    %753 = vmatprep.subr.mxu0 %v470
    %754 = vmatpush1.msra.mxu0 %v469
    %755 = vmatprep.subr.mxu0 %v474
    %756 = vmatpush1.msra.mxu0 %v473
    %757 = vmatprep.subr.mxu0 0.0
    %758 = vmatpush1.msra.mxu0 0.0
    %759 = vmatprep.subr.mxu0 0.0
    %760 = vmatpush1.msra.mxu0 0.0
    %761 = vmatprep.subr.mxu0 0.0
    %762 = vmatpush1.msra.mxu0 0.0
    %763 = vmatprep.subr.mxu0 0.0
    %764 = vmatpush1.msra.mxu0 0.0
    %765 = vmatprep.subr.mxu0 0.0
    %766 = vmatpush1.msra.mxu0 0.0
    %767 = vmatprep.subr.mxu0 0.0
    %768 = vmatpush1.msra.mxu0 0.0
    %769 = vmatprep.subr.mxu0 0.0
    %770 = vmatpush1.msra.mxu0 0.0
    %771 = vmatprep.subr.mxu0 0.0
    %772 = vmatpush1.msra.mxu0 0.0
    %773 = vmatprep.subr.mxu0 0.0
    %774 = vmatpush1.msra.mxu0 0.0
    %775 = vmatprep.subr.mxu0 0.0
    %776 = vmatpush1.msra.mxu0 0.0
    %777 = vmatprep.subr.mxu0 0.0
    %778 = vmatpush1.msra.mxu0 0.0
    %779 = vmatprep.subr.mxu0 0.0
    %780 = vmatpush1.msra.mxu0 0.0
    %781 = vmatprep.subr.mxu0 0.0
    %782 = vmatpush1.msra.mxu0 0.0
    %783 = vmatprep.subr.mxu0 0.0
    %784 = vmatpush1.msra.mxu0 0.0
    %785 = vmatprep.subr.mxu0 0.0
    %786 = vmatpush1.msra.mxu0 0.0
    %787 = vmatprep.subr.mxu0 0.0
    %788 = vmatpush1.msra.mxu0 0.0
    %789 = vmatprep.mubr.f32.mxu0 0.0
    %790 = vmatmul.mubr.f32.gmra.mrb[0].mxu0 %v648
    %v791 = vpop.f32.mrb[0].mxu0
    %v792 = vadd.f32 0.0, %v791
    %v793 = vpop.f32.mrb[0].mxu0
    %v794 = vadd.f32 0.0, %v793
    %795 = vdwg.mxu0
    %v796 = vadd.f32 %v650, %v721
    %v797 = vadd.f32 %v651, %v723
    %v798 = vadd.f32 %v652, %v792
    %v799 = vadd.f32 %v653, %v794
    %v800 = vxor.u32 %v796, 2147483648
    %v801 = vmul.f32 %v800, 1.442695
    %v802 = vpow.pop %v801
    %v803 = vadd.f32 %v802, 1.0
    %v804 = vrcp.pop %v803
    %v805 = vmul.f32 1.0, %v804
    %v806 = vxor.u32 %v797, 2147483648
    %v807 = vmul.f32 %v806, 1.442695
    %v808 = vpow.pop %v807
    %v809 = vadd.f32 %v808, 1.0
    %v810 = vrcp.pop %v809
    %v811 = vmul.f32 1.0, %v810
    %v812 = vtanh.pop %v798
    %v813 = vxor.u32 %v799, 2147483648
    %v814 = vmul.f32 %v813, 1.442695
    %v815 = vpow.pop %v814
    %v816 = vadd.f32 %v815, 1.0
    %v817 = vrcp.pop %v816
    %v818 = vmul.f32 1.0, %v817
    %v819 = vmul.f32 %v811, %v646
    %v820 = vmul.f32 %v805, %v812
    %v821 = vadd.f32 %v819, %v820
    %v822 = vtanh.pop %v821
    %v823 = vmul.f32 %v818, %v822
    %824 = vst [vmem:[#allocation3 + $0x8] sm:$0xff] %v823
    %v825 = vld [vmem:[#allocation2 + $0x40] sm:$0xff]
    %v826 = vld [vmem:[#allocation2 + $0x48] sm:$0xff]
    %v827 = vld [vmem:[#allocation2 + $0x50] sm:$0xff]
    %v828 = vld [vmem:[#allocation2 + $0x58] sm:$0xff]
    %829 = vmatprep.subr.mxu0 %v412
    %830 = vmatpush1.msra.mxu0 %v411
    %831 = vmatprep.subr.mxu0 %v416
    %832 = vmatpush1.msra.mxu0 %v415
    %833 = vmatprep.subr.mxu0 %v420
    %834 = vmatpush1.msra.mxu0 %v419
    %835 = vmatprep.subr.mxu0 %v424
    %836 = vmatpush1.msra.mxu0 %v423
    %837 = vmatprep.subr.mxu0 %v428
    %838 = vmatpush1.msra.mxu0 %v427
    %839 = vmatprep.subr.mxu0 %v432
    %840 = vmatpush1.msra.mxu0 %v431
    %841 = vmatprep.subr.mxu0 %v436
    %842 = vmatpush1.msra.mxu0 %v435
    %843 = vmatprep.subr.mxu0 %v440
    %844 = vmatpush1.msra.mxu0 %v439
    %845 = vmatprep.subr.mxu0 %v444
    %846 = vmatpush1.msra.mxu0 %v443
    %847 = vmatprep.subr.mxu0 %v448
    %848 = vmatpush1.msra.mxu0 %v447
    %849 = vmatprep.subr.mxu0 %v452
    %850 = vmatpush1.msra.mxu0 %v451
    %851 = vmatprep.subr.mxu0 %v456
    %852 = vmatpush1.msra.mxu0 %v455
    %853 = vmatprep.subr.mxu0 %v460
    %854 = vmatpush1.msra.mxu0 %v459
    %855 = vmatprep.subr.mxu0 %v464
    %856 = vmatpush1.msra.mxu0 %v463
    %857 = vmatprep.subr.mxu0 %v468
    %858 = vmatpush1.msra.mxu0 %v467
    %859 = vmatprep.subr.mxu0 %v472
    %860 = vmatpush1.msra.mxu0 %v471
    %861 = vmatprep.subr.mxu0 0.0
    %862 = vmatpush1.msra.mxu0 0.0
    %863 = vmatprep.subr.mxu0 0.0
    %864 = vmatpush1.msra.mxu0 0.0
    %865 = vmatprep.subr.mxu0 0.0
    %866 = vmatpush1.msra.mxu0 0.0
    %867 = vmatprep.subr.mxu0 0.0
    %868 = vmatpush1.msra.mxu0 0.0
    %869 = vmatprep.subr.mxu0 0.0
    %870 = vmatpush1.msra.mxu0 0.0
    %871 = vmatprep.subr.mxu0 0.0
    %872 = vmatpush1.msra.mxu0 0.0
    %873 = vmatprep.subr.mxu0 0.0
    %874 = vmatpush1.msra.mxu0 0.0
    %875 = vmatprep.subr.mxu0 0.0
    %876 = vmatpush1.msra.mxu0 0.0
    %877 = vmatprep.subr.mxu0 0.0
    %878 = vmatpush1.msra.mxu0 0.0
    %879 = vmatprep.subr.mxu0 0.0
    %880 = vmatpush1.msra.mxu0 0.0
    %881 = vmatprep.subr.mxu0 0.0
    %882 = vmatpush1.msra.mxu0 0.0
    %883 = vmatprep.subr.mxu0 0.0
    %884 = vmatpush1.msra.mxu0 0.0
    %885 = vmatprep.subr.mxu0 0.0
    %886 = vmatpush1.msra.mxu0 0.0
    %887 = vmatprep.subr.mxu0 0.0
    %888 = vmatpush1.msra.mxu0 0.0
    %889 = vmatprep.subr.mxu0 0.0
    %890 = vmatpush1.msra.mxu0 0.0
    %891 = vmatprep.subr.mxu0 0.0
    %892 = vmatpush1.msra.mxu0 0.0
    %893 = vmatprep.mubr.f32.mxu0 0.0
    %894 = vmatmul.mubr.f32.gmra.mrb[0].mxu0 %v823
    %v895 = vpop.f32.mrb[0].mxu0
    %v896 = vadd.f32 0.0, %v895
    %v897 = vpop.f32.mrb[0].mxu0
    %v898 = vadd.f32 0.0, %v897
    %899 = vdwg.mxu0
    %900 = vmatprep.subr.mxu0 %v414
    %901 = vmatpush1.msra.mxu0 %v413
    %902 = vmatprep.subr.mxu0 %v418
    %903 = vmatpush1.msra.mxu0 %v417
    %904 = vmatprep.subr.mxu0 %v422
    %905 = vmatpush1.msra.mxu0 %v421
    %906 = vmatprep.subr.mxu0 %v426
    %907 = vmatpush1.msra.mxu0 %v425
    %908 = vmatprep.subr.mxu0 %v430
    %909 = vmatpush1.msra.mxu0 %v429
    %910 = vmatprep.subr.mxu0 %v434
    %911 = vmatpush1.msra.mxu0 %v433
    %912 = vmatprep.subr.mxu0 %v438
    %913 = vmatpush1.msra.mxu0 %v437
    %914 = vmatprep.subr.mxu0 %v442
    %915 = vmatpush1.msra.mxu0 %v441
    %916 = vmatprep.subr.mxu0 %v446
    %917 = vmatpush1.msra.mxu0 %v445
    %918 = vmatprep.subr.mxu0 %v450
    %919 = vmatpush1.msra.mxu0 %v449
    %920 = vmatprep.subr.mxu0 %v454
    %921 = vmatpush1.msra.mxu0 %v453
    %922 = vmatprep.subr.mxu0 %v458
    %923 = vmatpush1.msra.mxu0 %v457
    %924 = vmatprep.subr.mxu0 %v462
    %925 = vmatpush1.msra.mxu0 %v461
    %926 = vmatprep.subr.mxu0 %v466
    %927 = vmatpush1.msra.mxu0 %v465
    %928 = vmatprep.subr.mxu0 %v470
    %929 = vmatpush1.msra.mxu0 %v469
    %930 = vmatprep.subr.mxu0 %v474
    %931 = vmatpush1.msra.mxu0 %v473
    %932 = vmatprep.subr.mxu0 0.0
    %933 = vmatpush1.msra.mxu0 0.0
    %934 = vmatprep.subr.mxu0 0.0
    %935 = vmatpush1.msra.mxu0 0.0
    %936 = vmatprep.subr.mxu0 0.0
    %937 = vmatpush1.msra.mxu0 0.0
    %938 = vmatprep.subr.mxu0 0.0
    %939 = vmatpush1.msra.mxu0 0.0
    %940 = vmatprep.subr.mxu0 0.0
    %941 = vmatpush1.msra.mxu0 0.0
    %942 = vmatprep.subr.mxu0 0.0
    %943 = vmatpush1.msra.mxu0 0.0
    %944 = vmatprep.subr.mxu0 0.0
    %945 = vmatpush1.msra.mxu0 0.0
    %946 = vmatprep.subr.mxu0 0.0
    %947 = vmatpush1.msra.mxu0 0.0
    %948 = vmatprep.subr.mxu0 0.0
    %949 = vmatpush1.msra.mxu0 0.0
    %950 = vmatprep.subr.mxu0 0.0
    %951 = vmatpush1.msra.mxu0 0.0
    %952 = vmatprep.subr.mxu0 0.0
    %953 = vmatpush1.msra.mxu0 0.0
    %954 = vmatprep.subr.mxu0 0.0
    %955 = vmatpush1.msra.mxu0 0.0
    %956 = vmatprep.subr.mxu0 0.0
    %957 = vmatpush1.msra.mxu0 0.0
    %958 = vmatprep.subr.mxu0 0.0
    %959 = vmatpush1.msra.mxu0 0.0
    %960 = vmatprep.subr.mxu0 0.0
    %961 = vmatpush1.msra.mxu0 0.0
    %962 = vmatprep.subr.mxu0 0.0
    %963 = vmatpush1.msra.mxu0 0.0
    %964 = vmatprep.mubr.f32.mxu0 0.0
    %965 = vmatmul.mubr.f32.gmra.mrb[0].mxu0 %v823
    %v966 = vpop.f32.mrb[0].mxu0
    %v967 = vadd.f32 0.0, %v966
    %v968 = vpop.f32.mrb[0].mxu0
    %v969 = vadd.f32 0.0, %v968
    %970 = vdwg.mxu0
    %v971 = vadd.f32 %v825, %v896
    %v972 = vadd.f32 %v826, %v898
    %v973 = vadd.f32 %v827, %v967
    %v974 = vadd.f32 %v828, %v969
    %v975 = vxor.u32 %v971, 2147483648
    %v976 = vmul.f32 %v975, 1.442695
    %v977 = vpow.pop %v976
    %v978 = vadd.f32 %v977, 1.0
    %v979 = vrcp.pop %v978
    %v980 = vmul.f32 1.0, %v979
    %v981 = vxor.u32 %v972, 2147483648
    %v982 = vmul.f32 %v981, 1.442695
    %v983 = vpow.pop %v982
    %v984 = vadd.f32 %v983, 1.0
    %v985 = vrcp.pop %v984
    %v986 = vmul.f32 1.0, %v985
    %v987 = vtanh.pop %v973
    %v988 = vxor.u32 %v974, 2147483648
    %v989 = vmul.f32 %v988, 1.442695
    %v990 = vpow.pop %v989
    %v991 = vadd.f32 %v990, 1.0
    %v992 = vrcp.pop %v991
    %v993 = vmul.f32 1.0, %v992
    %v994 = vmul.f32 %v986, %v821
    %v995 = vmul.f32 %v980, %v987
    %v996 = vadd.f32 %v994, %v995
    %v997 = vtanh.pop %v996
    %v998 = vmul.f32 %v993, %v997
    %999 = vst [vmem:[#allocation3 + $0x10] sm:$0xff] %v998
    %v1000 = vld [vmem:[#allocation2 + $0x60] sm:$0xff]
    %v1001 = vld [vmem:[#allocation2 + $0x68] sm:$0xff]
    %v1002 = vld [vmem:[#allocation2 + $0x70] sm:$0xff]
    %v1003 = vld [vmem:[#allocation2 + $0x78] sm:$0xff]
    %1004 = vmatprep.subr.mxu0 %v412
    %1005 = vmatpush1.msra.mxu0 %v411
    %1006 = vmatprep.subr.mxu0 %v416
    %1007 = vmatpush1.msra.mxu0 %v415
    %1008 = vmatprep.subr.mxu0 %v420
    %1009 = vmatpush1.msra.mxu0 %v419
    %1010 = vmatprep.subr.mxu0 %v424
    %1011 = vmatpush1.msra.mxu0 %v423
    %1012 = vmatprep.subr.mxu0 %v428
    %1013 = vmatpush1.msra.mxu0 %v427
    %1014 = vmatprep.subr.mxu0 %v432
    %1015 = vmatpush1.msra.mxu0 %v431
    %1016 = vmatprep.subr.mxu0 %v436
    %1017 = vmatpush1.msra.mxu0 %v435
    %1018 = vmatprep.subr.mxu0 %v440
    %1019 = vmatpush1.msra.mxu0 %v439
    %1020 = vmatprep.subr.mxu0 %v444
    %1021 = vmatpush1.msra.mxu0 %v443
    %1022 = vmatprep.subr.mxu0 %v448
    %1023 = vmatpush1.msra.mxu0 %v447
    %1024 = vmatprep.subr.mxu0 %v452
    %1025 = vmatpush1.msra.mxu0 %v451
    %1026 = vmatprep.subr.mxu0 %v456
    %1027 = vmatpush1.msra.mxu0 %v455
    %1028 = vmatprep.subr.mxu0 %v460
    %1029 = vmatpush1.msra.mxu0 %v459
    %1030 = vmatprep.subr.mxu0 %v464
    %1031 = vmatpush1.msra.mxu0 %v463
    %1032 = vmatprep.subr.mxu0 %v468
    %1033 = vmatpush1.msra.mxu0 %v467
    %1034 = vmatprep.subr.mxu0 %v472
    %1035 = vmatpush1.msra.mxu0 %v471
    %1036 = vmatprep.subr.mxu0 0.0
    %1037 = vmatpush1.msra.mxu0 0.0
    %1038 = vmatprep.subr.mxu0 0.0
    %1039 = vmatpush1.msra.mxu0 0.0
    %1040 = vmatprep.subr.mxu0 0.0
    %1041 = vmatpush1.msra.mxu0 0.0
    %1042 = vmatprep.subr.mxu0 0.0
    %1043 = vmatpush1.msra.mxu0 0.0
    %1044 = vmatprep.subr.mxu0 0.0
    %1045 = vmatpush1.msra.mxu0 0.0
    %1046 = vmatprep.subr.mxu0 0.0
    %1047 = vmatpush1.msra.mxu0 0.0
    %1048 = vmatprep.subr.mxu0 0.0
    %1049 = vmatpush1.msra.mxu0 0.0
    %1050 = vmatprep.subr.mxu0 0.0
    %1051 = vmatpush1.msra.mxu0 0.0
    %1052 = vmatprep.subr.mxu0 0.0
    %1053 = vmatpush1.msra.mxu0 0.0
    %1054 = vmatprep.subr.mxu0 0.0
    %1055 = vmatpush1.msra.mxu0 0.0
    %1056 = vmatprep.subr.mxu0 0.0
    %1057 = vmatpush1.msra.mxu0 0.0
    %1058 = vmatprep.subr.mxu0 0.0
    %1059 = vmatpush1.msra.mxu0 0.0
    %1060 = vmatprep.subr.mxu0 0.0
    %1061 = vmatpush1.msra.mxu0 0.0
    %1062 = vmatprep.subr.mxu0 0.0
    %1063 = vmatpush1.msra.mxu0 0.0
    %1064 = vmatprep.subr.mxu0 0.0
    %1065 = vmatpush1.msra.mxu0 0.0
    %1066 = vmatprep.subr.mxu0 0.0
    %1067 = vmatpush1.msra.mxu0 0.0
    %1068 = vmatprep.mubr.f32.mxu0 0.0
    %1069 = vmatmul.mubr.f32.gmra.mrb[0].mxu0 %v998
    %v1070 = vpop.f32.mrb[0].mxu0
    %v1071 = vadd.f32 0.0, %v1070
    %v1072 = vpop.f32.mrb[0].mxu0
    %v1073 = vadd.f32 0.0, %v1072
    %1074 = vdwg.mxu0
    %1075 = vmatprep.subr.mxu0 %v414
    %1076 = vmatpush1.msra.mxu0 %v413
    %1077 = vmatprep.subr.mxu0 %v418
    %1078 = vmatpush1.msra.mxu0 %v417
    %1079 = vmatprep.subr.mxu0 %v422
    %1080 = vmatpush1.msra.mxu0 %v421
    %1081 = vmatprep.subr.mxu0 %v426
    %1082 = vmatpush1.msra.mxu0 %v425
    %1083 = vmatprep.subr.mxu0 %v430
    %1084 = vmatpush1.msra.mxu0 %v429
    %1085 = vmatprep.subr.mxu0 %v434
    %1086 = vmatpush1.msra.mxu0 %v433
    %1087 = vmatprep.subr.mxu0 %v438
    %1088 = vmatpush1.msra.mxu0 %v437
    %1089 = vmatprep.subr.mxu0 %v442
    %1090 = vmatpush1.msra.mxu0 %v441
    %1091 = vmatprep.subr.mxu0 %v446
    %1092 = vmatpush1.msra.mxu0 %v445
    %1093 = vmatprep.subr.mxu0 %v450
    %1094 = vmatpush1.msra.mxu0 %v449
    %1095 = vmatprep.subr.mxu0 %v454
    %1096 = vmatpush1.msra.mxu0 %v453
    %1097 = vmatprep.subr.mxu0 %v458
    %1098 = vmatpush1.msra.mxu0 %v457
    %1099 = vmatprep.subr.mxu0 %v462
    %1100 = vmatpush1.msra.mxu0 %v461
    %1101 = vmatprep.subr.mxu0 %v466
    %1102 = vmatpush1.msra.mxu0 %v465
    %1103 = vmatprep.subr.mxu0 %v470
    %1104 = vmatpush1.msra.mxu0 %v469
    %1105 = vmatprep.subr.mxu0 %v474
    %1106 = vmatpush1.msra.mxu0 %v473
    %1107 = vmatprep.subr.mxu0 0.0
    %1108 = vmatpush1.msra.mxu0 0.0
    %1109 = vmatprep.subr.mxu0 0.0
    %1110 = vmatpush1.msra.mxu0 0.0
    %1111 = vmatprep.subr.mxu0 0.0
    %1112 = vmatpush1.msra.mxu0 0.0
    %1113 = vmatprep.subr.mxu0 0.0
    %1114 = vmatpush1.msra.mxu0 0.0
    %1115 = vmatprep.subr.mxu0 0.0
    %1116 = vmatpush1.msra.mxu0 0.0
    %1117 = vmatprep.subr.mxu0 0.0
    %1118 = vmatpush1.msra.mxu0 0.0
    %1119 = vmatprep.subr.mxu0 0.0
    %1120 = vmatpush1.msra.mxu0 0.0
    %1121 = vmatprep.subr.mxu0 0.0
    %1122 = vmatpush1.msra.mxu0 0.0
    %1123 = vmatprep.subr.mxu0 0.0
    %1124 = vmatpush1.msra.mxu0 0.0
    %1125 = vmatprep.subr.mxu0 0.0
    %1126 = vmatpush1.msra.mxu0 0.0
    %1127 = vmatprep.subr.mxu0 0.0
    %1128 = vmatpush1.msra.mxu0 0.0
    %1129 = vmatprep.subr.mxu0 0.0
    %1130 = vmatpush1.msra.mxu0 0.0
    %1131 = vmatprep.subr.mxu0 0.0
    %1132 = vmatpush1.msra.mxu0 0.0
    %1133 = vmatprep.subr.mxu0 0.0
    %1134 = vmatpush1.msra.mxu0 0.0
    %1135 = vmatprep.subr.mxu0 0.0
    %1136 = vmatpush1.msra.mxu0 0.0
    %1137 = vmatprep.subr.mxu0 0.0
    %1138 = vmatpush1.msra.mxu0 0.0
    %1139 = vmatprep.mubr.f32.mxu0 0.0
    %1140 = vmatmul.mubr.f32.gmra.mrb[0].mxu0 %v998
    %v1141 = vpop.f32.mrb[0].mxu0
    %v1142 = vadd.f32 0.0, %v1141
    %v1143 = vpop.f32.mrb[0].mxu0
    %v1144 = vadd.f32 0.0, %v1143
    %1145 = vdwg.mxu0
    %v1146 = vadd.f32 %v1000, %v1071
    %v1147 = vadd.f32 %v1001, %v1073
    %v1148 = vadd.f32 %v1002, %v1142
    %v1149 = vadd.f32 %v1003, %v1144
    %v1150 = vxor.u32 %v1146, 2147483648
    %v1151 = vmul.f32 %v1150, 1.442695
    %v1152 = vpow.pop %v1151
    %v1153 = vadd.f32 %v1152, 1.0
    %v1154 = vrcp.pop %v1153
    %v1155 = vmul.f32 1.0, %v1154
    %v1156 = vxor.u32 %v1147, 2147483648
    %v1157 = vmul.f32 %v1156, 1.442695
    %v1158 = vpow.pop %v1157
    %v1159 = vadd.f32 %v1158, 1.0
    %v1160 = vrcp.pop %v1159
    %v1161 = vmul.f32 1.0, %v1160
    %v1162 = vtanh.pop %v1148
    %v1163 = vxor.u32 %v1149, 2147483648
    %v1164 = vmul.f32 %v1163, 1.442695
    %v1165 = vpow.pop %v1164
    %v1166 = vadd.f32 %v1165, 1.0
    %v1167 = vrcp.pop %v1166
    %v1168 = vmul.f32 1.0, %v1167
    %v1169 = vmul.f32 %v1161, %v996
    %v1170 = vmul.f32 %v1155, %v1162
    %v1171 = vadd.f32 %v1169, %v1170
    %v1172 = vtanh.pop %v1171
    %v1173 = vmul.f32 %v1168, %v1172
    %1174 = vst [vmem:[#allocation3 + $0x18] sm:$0xff] %v1173
    %v1175 = vld [vmem:[#allocation2 + $0x80] sm:$0xff]
    %v1176 = vld [vmem:[#allocation2 + $0x88] sm:$0xff]
    %v1177 = vld [vmem:[#allocation2 + $0x90] sm:$0xff]
    %v1178 = vld [vmem:[#allocation2 + $0x98] sm:$0xff]
    %1179 = vmatprep.subr.mxu0 %v412
    %1180 = vmatpush1.msra.mxu0 %v411
    %1181 = vmatprep.subr.mxu0 %v416
    %1182 = vmatpush1.msra.mxu0 %v415
    %1183 = vmatprep.subr.mxu0 %v420
    %1184 = vmatpush1.msra.mxu0 %v419
    %1185 = vmatprep.subr.mxu0 %v424
    %1186 = vmatpush1.msra.mxu0 %v423
    %1187 = vmatprep.subr.mxu0 %v428
    %1188 = vmatpush1.msra.mxu0 %v427
    %1189 = vmatprep.subr.mxu0 %v432
    %1190 = vmatpush1.msra.mxu0 %v431
    %1191 = vmatprep.subr.mxu0 %v436
    %1192 = vmatpush1.msra.mxu0 %v435
    %1193 = vmatprep.subr.mxu0 %v440
    %1194 = vmatpush1.msra.mxu0 %v439
    %1195 = vmatprep.subr.mxu0 %v444
    %1196 = vmatpush1.msra.mxu0 %v443
    %1197 = vmatprep.subr.mxu0 %v448
    %1198 = vmatpush1.msra.mxu0 %v447
    %1199 = vmatprep.subr.mxu0 %v452
    %1200 = vmatpush1.msra.mxu0 %v451
    %1201 = vmatprep.subr.mxu0 %v456
    %1202 = vmatpush1.msra.mxu0 %v455
    %1203 = vmatprep.subr.mxu0 %v460
    %1204 = vmatpush1.msra.mxu0 %v459
    %1205 = vmatprep.subr.mxu0 %v464
    %1206 = vmatpush1.msra.mxu0 %v463
    %1207 = vmatprep.subr.mxu0 %v468
    %1208 = vmatpush1.msra.mxu0 %v467
    %1209 = vmatprep.subr.mxu0 %v472
    %1210 = vmatpush1.msra.mxu0 %v471
    %1211 = vmatprep.subr.mxu0 0.0
    %1212 = vmatpush1.msra.mxu0 0.0
    %1213 = vmatprep.subr.mxu0 0.0
    %1214 = vmatpush1.msra.mxu0 0.0
    %1215 = vmatprep.subr.mxu0 0.0
    %1216 = vmatpush1.msra.mxu0 0.0
    %1217 = vmatprep.subr.mxu0 0.0
    %1218 = vmatpush1.msra.mxu0 0.0
    %1219 = vmatprep.subr.mxu0 0.0
    %1220 = vmatpush1.msra.mxu0 0.0
    %1221 = vmatprep.subr.mxu0 0.0
    %1222 = vmatpush1.msra.mxu0 0.0
    %1223 = vmatprep.subr.mxu0 0.0
    %1224 = vmatpush1.msra.mxu0 0.0
    %1225 = vmatprep.subr.mxu0 0.0
    %1226 = vmatpush1.msra.mxu0 0.0
    %1227 = vmatprep.subr.mxu0 0.0
    %1228 = vmatpush1.msra.mxu0 0.0
    %1229 = vmatprep.subr.mxu0 0.0
    %1230 = vmatpush1.msra.mxu0 0.0
    %1231 = vmatprep.subr.mxu0 0.0
    %1232 = vmatpush1.msra.mxu0 0.0
    %1233 = vmatprep.subr.mxu0 0.0
    %1234 = vmatpush1.msra.mxu0 0.0
    %1235 = vmatprep.subr.mxu0 0.0
    %1236 = vmatpush1.msra.mxu0 0.0
    %1237 = vmatprep.subr.mxu0 0.0
    %1238 = vmatpush1.msra.mxu0 0.0
    %1239 = vmatprep.subr.mxu0 0.0
    %1240 = vmatpush1.msra.mxu0 0.0
    %1241 = vmatprep.subr.mxu0 0.0
    %1242 = vmatpush1.msra.mxu0 0.0
    %1243 = vmatprep.mubr.f32.mxu0 0.0
    %1244 = vmatmul.mubr.f32.gmra.mrb[0].mxu0 %v1173
    %v1245 = vpop.f32.mrb[0].mxu0
    %v1246 = vadd.f32 0.0, %v1245
    %v1247 = vpop.f32.mrb[0].mxu0
    %v1248 = vadd.f32 0.0, %v1247
    %1249 = vdwg.mxu0
    %1250 = vmatprep.subr.mxu0 %v414
    %1251 = vmatpush1.msra.mxu0 %v413
    %1252 = vmatprep.subr.mxu0 %v418
    %1253 = vmatpush1.msra.mxu0 %v417
    %1254 = vmatprep.subr.mxu0 %v422
    %1255 = vmatpush1.msra.mxu0 %v421
    %1256 = vmatprep.subr.mxu0 %v426
    %1257 = vmatpush1.msra.mxu0 %v425
    %1258 = vmatprep.subr.mxu0 %v430
    %1259 = vmatpush1.msra.mxu0 %v429
    %1260 = vmatprep.subr.mxu0 %v434
    %1261 = vmatpush1.msra.mxu0 %v433
    %1262 = vmatprep.subr.mxu0 %v438
    %1263 = vmatpush1.msra.mxu0 %v437
    %1264 = vmatprep.subr.mxu0 %v442
    %1265 = vmatpush1.msra.mxu0 %v441
    %1266 = vmatprep.subr.mxu0 %v446
    %1267 = vmatpush1.msra.mxu0 %v445
    %1268 = vmatprep.subr.mxu0 %v450
    %1269 = vmatpush1.msra.mxu0 %v449
    %1270 = vmatprep.subr.mxu0 %v454
    %1271 = vmatpush1.msra.mxu0 %v453
    %1272 = vmatprep.subr.mxu0 %v458
    %1273 = vmatpush1.msra.mxu0 %v457
    %1274 = vmatprep.subr.mxu0 %v462
    %1275 = vmatpush1.msra.mxu0 %v461
    %1276 = vmatprep.subr.mxu0 %v466
    %1277 = vmatpush1.msra.mxu0 %v465
    %1278 = vmatprep.subr.mxu0 %v470
    %1279 = vmatpush1.msra.mxu0 %v469
    %1280 = vmatprep.subr.mxu0 %v474
    %1281 = vmatpush1.msra.mxu0 %v473
    %1282 = vmatprep.subr.mxu0 0.0
    %1283 = vmatpush1.msra.mxu0 0.0
    %1284 = vmatprep.subr.mxu0 0.0
    %1285 = vmatpush1.msra.mxu0 0.0
    %1286 = vmatprep.subr.mxu0 0.0
    %1287 = vmatpush1.msra.mxu0 0.0
    %1288 = vmatprep.subr.mxu0 0.0
    %1289 = vmatpush1.msra.mxu0 0.0
    %1290 = vmatprep.subr.mxu0 0.0
    %1291 = vmatpush1.msra.mxu0 0.0
    %1292 = vmatprep.subr.mxu0 0.0
    %1293 = vmatpush1.msra.mxu0 0.0
    %1294 = vmatprep.subr.mxu0 0.0
    %1295 = vmatpush1.msra.mxu0 0.0
    %1296 = vmatprep.subr.mxu0 0.0
    %1297 = vmatpush1.msra.mxu0 0.0
    %1298 = vmatprep.subr.mxu0 0.0
    %1299 = vmatpush1.msra.mxu0 0.0
    %1300 = vmatprep.subr.mxu0 0.0
    %1301 = vmatpush1.msra.mxu0 0.0
    %1302 = vmatprep.subr.mxu0 0.0
    %1303 = vmatpush1.msra.mxu0 0.0
    %1304 = vmatprep.subr.mxu0 0.0
    %1305 = vmatpush1.msra.mxu0 0.0
    %1306 = vmatprep.subr.mxu0 0.0
    %1307 = vmatpush1.msra.mxu0 0.0
    %1308 = vmatprep.subr.mxu0 0.0
    %1309 = vmatpush1.msra.mxu0 0.0
    %1310 = vmatprep.subr.mxu0 0.0
    %1311 = vmatpush1.msra.mxu0 0.0
    %1312 = vmatprep.subr.mxu0 0.0
    %1313 = vmatpush1.msra.mxu0 0.0
    %1314 = vmatprep.mubr.f32.mxu0 0.0
    %1315 = vmatmul.mubr.f32.gmra.mrb[0].mxu0 %v1173
    %v1316 = vpop.f32.mrb[0].mxu0
    %v1317 = vadd.f32 0.0, %v1316
    %v1318 = vpop.f32.mrb[0].mxu0
    %v1319 = vadd.f32 0.0, %v1318
    %1320 = vdwg.mxu0
    %v1321 = vadd.f32 %v1175, %v1246
    %v1322 = vadd.f32 %v1176, %v1248
    %v1323 = vadd.f32 %v1177, %v1317
    %v1324 = vadd.f32 %v1178, %v1319
    %v1325 = vxor.u32 %v1321, 2147483648
    %v1326 = vmul.f32 %v1325, 1.442695
    %v1327 = vpow.pop %v1326
    %v1328 = vadd.f32 %v1327, 1.0
    %v1329 = vrcp.pop %v1328
    %v1330 = vmul.f32 1.0, %v1329
    %v1331 = vxor.u32 %v1322, 2147483648
    %v1332 = vmul.f32 %v1331, 1.442695
    %v1333 = vpow.pop %v1332
    %v1334 = vadd.f32 %v1333, 1.0
    %v1335 = vrcp.pop %v1334
    %v1336 = vmul.f32 1.0, %v1335
    %v1337 = vtanh.pop %v1323
    %v1338 = vxor.u32 %v1324, 2147483648
    %v1339 = vmul.f32 %v1338, 1.442695
    %v1340 = vpow.pop %v1339
    %v1341 = vadd.f32 %v1340, 1.0
    %v1342 = vrcp.pop %v1341
    %v1343 = vmul.f32 1.0, %v1342
    %v1344 = vmul.f32 %v1336, %v1171
    %v1345 = vmul.f32 %v1330, %v1337
    %v1346 = vadd.f32 %v1344, %v1345
    %v1347 = vtanh.pop %v1346
    %v1348 = vmul.f32 %v1343, %v1347
    %1349 = vst [vmem:[#allocation3 + $0x20] sm:$0xff] %v1348
    %v1350 = vld [vmem:[#allocation2 + $0xa0] sm:$0xff]
    %v1351 = vld [vmem:[#allocation2 + $0xa8] sm:$0xff]
    %v1352 = vld [vmem:[#allocation2 + $0xb0] sm:$0xff]
    %v1353 = vld [vmem:[#allocation2 + $0xb8] sm:$0xff]
    %1354 = vmatprep.subr.mxu0 %v412
    %1355 = vmatpush1.msra.mxu0 %v411
    %1356 = vmatprep.subr.mxu0 %v416
    %1357 = vmatpush1.msra.mxu0 %v415
    %1358 = vmatprep.subr.mxu0 %v420
    %1359 = vmatpush1.msra.mxu0 %v419
    %1360 = vmatprep.subr.mxu0 %v424
    %1361 = vmatpush1.msra.mxu0 %v423
    %1362 = vmatprep.subr.mxu0 %v428
    %1363 = vmatpush1.msra.mxu0 %v427
    %1364 = vmatprep.subr.mxu0 %v432
    %1365 = vmatpush1.msra.mxu0 %v431
    %1366 = vmatprep.subr.mxu0 %v436
    %1367 = vmatpush1.msra.mxu0 %v435
    %1368 = vmatprep.subr.mxu0 %v440
    %1369 = vmatpush1.msra.mxu0 %v439
    %1370 = vmatprep.subr.mxu0 %v444
    %1371 = vmatpush1.msra.mxu0 %v443
    %1372 = vmatprep.subr.mxu0 %v448
    %1373 = vmatpush1.msra.mxu0 %v447
    %1374 = vmatprep.subr.mxu0 %v452
    %1375 = vmatpush1.msra.mxu0 %v451
    %1376 = vmatprep.subr.mxu0 %v456
    %1377 = vmatpush1.msra.mxu0 %v455
    %1378 = vmatprep.subr.mxu0 %v460
    %1379 = vmatpush1.msra.mxu0 %v459
    %1380 = vmatprep.subr.mxu0 %v464
    %1381 = vmatpush1.msra.mxu0 %v463
    %1382 = vmatprep.subr.mxu0 %v468
    %1383 = vmatpush1.msra.mxu0 %v467
    %1384 = vmatprep.subr.mxu0 %v472
    %1385 = vmatpush1.msra.mxu0 %v471
    %1386 = vmatprep.subr.mxu0 0.0
    %1387 = vmatpush1.msra.mxu0 0.0
    %1388 = vmatprep.subr.mxu0 0.0
    %1389 = vmatpush1.msra.mxu0 0.0
    %1390 = vmatprep.subr.mxu0 0.0
    %1391 = vmatpush1.msra.mxu0 0.0
    %1392 = vmatprep.subr.mxu0 0.0
    %1393 = vmatpush1.msra.mxu0 0.0
    %1394 = vmatprep.subr.mxu0 0.0
    %1395 = vmatpush1.msra.mxu0 0.0
    %1396 = vmatprep.subr.mxu0 0.0
    %1397 = vmatpush1.msra.mxu0 0.0
    %1398 = vmatprep.subr.mxu0 0.0
    %1399 = vmatpush1.msra.mxu0 0.0
    %1400 = vmatprep.subr.mxu0 0.0
    %1401 = vmatpush1.msra.mxu0 0.0
    %1402 = vmatprep.subr.mxu0 0.0
    %1403 = vmatpush1.msra.mxu0 0.0
    %1404 = vmatprep.subr.mxu0 0.0
    %1405 = vmatpush1.msra.mxu0 0.0
    %1406 = vmatprep.subr.mxu0 0.0
    %1407 = vmatpush1.msra.mxu0 0.0
    %1408 = vmatprep.subr.mxu0 0.0
    %1409 = vmatpush1.msra.mxu0 0.0
    %1410 = vmatprep.subr.mxu0 0.0
    %1411 = vmatpush1.msra.mxu0 0.0
    %1412 = vmatprep.subr.mxu0 0.0
    %1413 = vmatpush1.msra.mxu0 0.0
    %1414 = vmatprep.subr.mxu0 0.0
    %1415 = vmatpush1.msra.mxu0 0.0
    %1416 = vmatprep.subr.mxu0 0.0
    %1417 = vmatpush1.msra.mxu0 0.0
    %1418 = vmatprep.mubr.f32.mxu0 0.0
    %1419 = vmatmul.mubr.f32.gmra.mrb[0].mxu0 %v1348
    %v1420 = vpop.f32.mrb[0].mxu0
    %v1421 = vadd.f32 0.0, %v1420
    %v1422 = vpop.f32.mrb[0].mxu0
    %v1423 = vadd.f32 0.0, %v1422
    %1424 = vdwg.mxu0
    %1425 = vmatprep.subr.mxu0 %v414
    %1426 = vmatpush1.msra.mxu0 %v413
    %1427 = vmatprep.subr.mxu0 %v418
    %1428 = vmatpush1.msra.mxu0 %v417
    %1429 = vmatprep.subr.mxu0 %v422
    %1430 = vmatpush1.msra.mxu0 %v421
    %1431 = vmatprep.subr.mxu0 %v426
    %1432 = vmatpush1.msra.mxu0 %v425
    %1433 = vmatprep.subr.mxu0 %v430
    %1434 = vmatpush1.msra.mxu0 %v429
    %1435 = vmatprep.subr.mxu0 %v434
    %1436 = vmatpush1.msra.mxu0 %v433
    %1437 = vmatprep.subr.mxu0 %v438
    %1438 = vmatpush1.msra.mxu0 %v437
    %1439 = vmatprep.subr.mxu0 %v442
    %1440 = vmatpush1.msra.mxu0 %v441
    %1441 = vmatprep.subr.mxu0 %v446
    %1442 = vmatpush1.msra.mxu0 %v445
    %1443 = vmatprep.subr.mxu0 %v450
    %1444 = vmatpush1.msra.mxu0 %v449
    %1445 = vmatprep.subr.mxu0 %v454
    %1446 = vmatpush1.msra.mxu0 %v453
    %1447 = vmatprep.subr.mxu0 %v458
    %1448 = vmatpush1.msra.mxu0 %v457
    %1449 = vmatprep.subr.mxu0 %v462
    %1450 = vmatpush1.msra.mxu0 %v461
    %1451 = vmatprep.subr.mxu0 %v466
    %1452 = vmatpush1.msra.mxu0 %v465
    %1453 = vmatprep.subr.mxu0 %v470
    %1454 = vmatpush1.msra.mxu0 %v469
    %1455 = vmatprep.subr.mxu0 %v474
    %1456 = vmatpush1.msra.mxu0 %v473
    %1457 = vmatprep.subr.mxu0 0.0
    %1458 = vmatpush1.msra.mxu0 0.0
    %1459 = vmatprep.subr.mxu0 0.0
    %1460 = vmatpush1.msra.mxu0 0.0
    %1461 = vmatprep.subr.mxu0 0.0
    %1462 = vmatpush1.msra.mxu0 0.0
    %1463 = vmatprep.subr.mxu0 0.0
    %1464 = vmatpush1.msra.mxu0 0.0
    %1465 = vmatprep.subr.mxu0 0.0
    %1466 = vmatpush1.msra.mxu0 0.0
    %1467 = vmatprep.subr.mxu0 0.0
    %1468 = vmatpush1.msra.mxu0 0.0
    %1469 = vmatprep.subr.mxu0 0.0
    %1470 = vmatpush1.msra.mxu0 0.0
    %1471 = vmatprep.subr.mxu0 0.0
    %1472 = vmatpush1.msra.mxu0 0.0
    %1473 = vmatprep.subr.mxu0 0.0
    %1474 = vmatpush1.msra.mxu0 0.0
    %1475 = vmatprep.subr.mxu0 0.0
    %1476 = vmatpush1.msra.mxu0 0.0
    %1477 = vmatprep.subr.mxu0 0.0
    %1478 = vmatpush1.msra.mxu0 0.0
    %1479 = vmatprep.subr.mxu0 0.0
    %1480 = vmatpush1.msra.mxu0 0.0
    %1481 = vmatprep.subr.mxu0 0.0
    %1482 = vmatpush1.msra.mxu0 0.0
    %1483 = vmatprep.subr.mxu0 0.0
    %1484 = vmatpush1.msra.mxu0 0.0
    %1485 = vmatprep.subr.mxu0 0.0
    %1486 = vmatpush1.msra.mxu0 0.0
    %1487 = vmatprep.subr.mxu0 0.0
    %1488 = vmatpush1.msra.mxu0 0.0
    %1489 = vmatprep.mubr.f32.mxu0 0.0
    %1490 = vmatmul.mubr.f32.gmra.mrb[0].mxu0 %v1348
    %v1491 = vpop.f32.mrb[0].mxu0
    %v1492 = vadd.f32 0.0, %v1491
    %v1493 = vpop.f32.mrb[0].mxu0
    %v1494 = vadd.f32 0.0, %v1493
    %1495 = vdwg.mxu0
    %v1496 = vadd.f32 %v1350, %v1421
    %v1497 = vadd.f32 %v1351, %v1423
    %v1498 = vadd.f32 %v1352, %v1492
    %v1499 = vadd.f32 %v1353, %v1494
    %v1500 = vxor.u32 %v1496, 2147483648
    %v1501 = vmul.f32 %v1500, 1.442695
    %v1502 = vpow.pop %v1501
    %v1503 = vadd.f32 %v1502, 1.0
    %v1504 = vrcp.pop %v1503
    %v1505 = vmul.f32 1.0, %v1504
    %v1506 = vxor.u32 %v1497, 2147483648
    %v1507 = vmul.f32 %v1506, 1.442695
    %v1508 = vpow.pop %v1507
    %v1509 = vadd.f32 %v1508, 1.0
    %v1510 = vrcp.pop %v1509
    %v1511 = vmul.f32 1.0, %v1510
    %v1512 = vtanh.pop %v1498
    %v1513 = vxor.u32 %v1499, 2147483648
    %v1514 = vmul.f32 %v1513, 1.442695
    %v1515 = vpow.pop %v1514
    %v1516 = vadd.f32 %v1515, 1.0
    %v1517 = vrcp.pop %v1516
    %v1518 = vmul.f32 1.0, %v1517
    %v1519 = vmul.f32 %v1511, %v1346
    %v1520 = vmul.f32 %v1505, %v1512
    %v1521 = vadd.f32 %v1519, %v1520
    %v1522 = vtanh.pop %v1521
    %v1523 = vmul.f32 %v1518, %v1522
    %1524 = vst [vmem:[#allocation3 + $0x28] sm:$0xff] %v1523
    %v1525 = vld [vmem:[#allocation2 + $0xc0] sm:$0xff]
    %v1526 = vld [vmem:[#allocation2 + $0xc8] sm:$0xff]
    %v1527 = vld [vmem:[#allocation2 + $0xd0] sm:$0xff]
    %v1528 = vld [vmem:[#allocation2 + $0xd8] sm:$0xff]
    %1529 = vmatprep.subr.mxu0 %v412
    %1530 = vmatpush1.msra.mxu0 %v411
    %1531 = vmatprep.subr.mxu0 %v416
    %1532 = vmatpush1.msra.mxu0 %v415
    %1533 = vmatprep.subr.mxu0 %v420
    %1534 = vmatpush1.msra.mxu0 %v419
    %1535 = vmatprep.subr.mxu0 %v424
    %1536 = vmatpush1.msra.mxu0 %v423
    %1537 = vmatprep.subr.mxu0 %v428
    %1538 = vmatpush1.msra.mxu0 %v427
    %1539 = vmatprep.subr.mxu0 %v432
    %1540 = vmatpush1.msra.mxu0 %v431
    %1541 = vmatprep.subr.mxu0 %v436
    %1542 = vmatpush1.msra.mxu0 %v435
    %1543 = vmatprep.subr.mxu0 %v440
    %1544 = vmatpush1.msra.mxu0 %v439
    %1545 = vmatprep.subr.mxu0 %v444
    %1546 = vmatpush1.msra.mxu0 %v443
    %1547 = vmatprep.subr.mxu0 %v448
    %1548 = vmatpush1.msra.mxu0 %v447
    %1549 = vmatprep.subr.mxu0 %v452
    %1550 = vmatpush1.msra.mxu0 %v451
    %1551 = vmatprep.subr.mxu0 %v456
    %1552 = vmatpush1.msra.mxu0 %v455
    %1553 = vmatprep.subr.mxu0 %v460
    %1554 = vmatpush1.msra.mxu0 %v459
    %1555 = vmatprep.subr.mxu0 %v464
    %1556 = vmatpush1.msra.mxu0 %v463
    %1557 = vmatprep.subr.mxu0 %v468
    %1558 = vmatpush1.msra.mxu0 %v467
    %1559 = vmatprep.subr.mxu0 %v472
    %1560 = vmatpush1.msra.mxu0 %v471
    %1561 = vmatprep.subr.mxu0 0.0
    %1562 = vmatpush1.msra.mxu0 0.0
    %1563 = vmatprep.subr.mxu0 0.0
    %1564 = vmatpush1.msra.mxu0 0.0
    %1565 = vmatprep.subr.mxu0 0.0
    %1566 = vmatpush1.msra.mxu0 0.0
    %1567 = vmatprep.subr.mxu0 0.0
    %1568 = vmatpush1.msra.mxu0 0.0
    %1569 = vmatprep.subr.mxu0 0.0
    %1570 = vmatpush1.msra.mxu0 0.0
    %1571 = vmatprep.subr.mxu0 0.0
    %1572 = vmatpush1.msra.mxu0 0.0
    %1573 = vmatprep.subr.mxu0 0.0
    %1574 = vmatpush1.msra.mxu0 0.0
    %1575 = vmatprep.subr.mxu0 0.0
    %1576 = vmatpush1.msra.mxu0 0.0
    %1577 = vmatprep.subr.mxu0 0.0
    %1578 = vmatpush1.msra.mxu0 0.0
    %1579 = vmatprep.subr.mxu0 0.0
    %1580 = vmatpush1.msra.mxu0 0.0
    %1581 = vmatprep.subr.mxu0 0.0
    %1582 = vmatpush1.msra.mxu0 0.0
    %1583 = vmatprep.subr.mxu0 0.0
    %1584 = vmatpush1.msra.mxu0 0.0
    %1585 = vmatprep.subr.mxu0 0.0
    %1586 = vmatpush1.msra.mxu0 0.0
    %1587 = vmatprep.subr.mxu0 0.0
    %1588 = vmatpush1.msra.mxu0 0.0
    %1589 = vmatprep.subr.mxu0 0.0
    %1590 = vmatpush1.msra.mxu0 0.0
    %1591 = vmatprep.subr.mxu0 0.0
    %1592 = vmatpush1.msra.mxu0 0.0
    %1593 = vmatprep.mubr.f32.mxu0 0.0
    %1594 = vmatmul.mubr.f32.gmra.mrb[0].mxu0 %v1523
    %v1595 = vpop.f32.mrb[0].mxu0
    %v1596 = vadd.f32 0.0, %v1595
    %v1597 = vpop.f32.mrb[0].mxu0
    %v1598 = vadd.f32 0.0, %v1597
    %1599 = vdwg.mxu0
    %1600 = vmatprep.subr.mxu0 %v414
    %1601 = vmatpush1.msra.mxu0 %v413
    %1602 = vmatprep.subr.mxu0 %v418
    %1603 = vmatpush1.msra.mxu0 %v417
    %1604 = vmatprep.subr.mxu0 %v422
    %1605 = vmatpush1.msra.mxu0 %v421
    %1606 = vmatprep.subr.mxu0 %v426
    %1607 = vmatpush1.msra.mxu0 %v425
    %1608 = vmatprep.subr.mxu0 %v430
    %1609 = vmatpush1.msra.mxu0 %v429
    %1610 = vmatprep.subr.mxu0 %v434
    %1611 = vmatpush1.msra.mxu0 %v433
    %1612 = vmatprep.subr.mxu0 %v438
    %1613 = vmatpush1.msra.mxu0 %v437
    %1614 = vmatprep.subr.mxu0 %v442
    %1615 = vmatpush1.msra.mxu0 %v441
    %1616 = vmatprep.subr.mxu0 %v446
    %1617 = vmatpush1.msra.mxu0 %v445
    %1618 = vmatprep.subr.mxu0 %v450
    %1619 = vmatpush1.msra.mxu0 %v449
    %1620 = vmatprep.subr.mxu0 %v454
    %1621 = vmatpush1.msra.mxu0 %v453
    %1622 = vmatprep.subr.mxu0 %v458
    %1623 = vmatpush1.msra.mxu0 %v457
    %1624 = vmatprep.subr.mxu0 %v462
    %1625 = vmatpush1.msra.mxu0 %v461
    %1626 = vmatprep.subr.mxu0 %v466
    %1627 = vmatpush1.msra.mxu0 %v465
    %1628 = vmatprep.subr.mxu0 %v470
    %1629 = vmatpush1.msra.mxu0 %v469
    %1630 = vmatprep.subr.mxu0 %v474
    %1631 = vmatpush1.msra.mxu0 %v473
    %1632 = vmatprep.subr.mxu0 0.0
    %1633 = vmatpush1.msra.mxu0 0.0
    %1634 = vmatprep.subr.mxu0 0.0
    %1635 = vmatpush1.msra.mxu0 0.0
    %1636 = vmatprep.subr.mxu0 0.0
    %1637 = vmatpush1.msra.mxu0 0.0
    %1638 = vmatprep.subr.mxu0 0.0
    %1639 = vmatpush1.msra.mxu0 0.0
    %1640 = vmatprep.subr.mxu0 0.0
    %1641 = vmatpush1.msra.mxu0 0.0
    %1642 = vmatprep.subr.mxu0 0.0
    %1643 = vmatpush1.msra.mxu0 0.0
    %1644 = vmatprep.subr.mxu0 0.0
    %1645 = vmatpush1.msra.mxu0 0.0
    %1646 = vmatprep.subr.mxu0 0.0
    %1647 = vmatpush1.msra.mxu0 0.0
    %1648 = vmatprep.subr.mxu0 0.0
    %1649 = vmatpush1.msra.mxu0 0.0
    %1650 = vmatprep.subr.mxu0 0.0
    %1651 = vmatpush1.msra.mxu0 0.0
    %1652 = vmatprep.subr.mxu0 0.0
    %1653 = vmatpush1.msra.mxu0 0.0
    %1654 = vmatprep.subr.mxu0 0.0
    %1655 = vmatpush1.msra.mxu0 0.0
    %1656 = vmatprep.subr.mxu0 0.0
    %1657 = vmatpush1.msra.mxu0 0.0
    %1658 = vmatprep.subr.mxu0 0.0
    %1659 = vmatpush1.msra.mxu0 0.0
    %1660 = vmatprep.subr.mxu0 0.0
    %1661 = vmatpush1.msra.mxu0 0.0
    %1662 = vmatprep.subr.mxu0 0.0
    %1663 = vmatpush1.msra.mxu0 0.0
    %1664 = vmatprep.mubr.f32.mxu0 0.0
    %1665 = vmatmul.mubr.f32.gmra.mrb[0].mxu0 %v1523
    %v1666 = vpop.f32.mrb[0].mxu0
    %v1667 = vadd.f32 0.0, %v1666
    %v1668 = vpop.f32.mrb[0].mxu0
    %v1669 = vadd.f32 0.0, %v1668
    %1670 = vdwg.mxu0
    %v1671 = vadd.f32 %v1525, %v1596
    %v1672 = vadd.f32 %v1526, %v1598
    %v1673 = vadd.f32 %v1527, %v1667
    %v1674 = vadd.f32 %v1528, %v1669
    %v1675 = vxor.u32 %v1671, 2147483648
    %v1676 = vmul.f32 %v1675, 1.442695
    %v1677 = vpow.pop %v1676
    %v1678 = vadd.f32 %v1677, 1.0
    %v1679 = vrcp.pop %v1678
    %v1680 = vmul.f32 1.0, %v1679
    %v1681 = vxor.u32 %v1672, 2147483648
    %v1682 = vmul.f32 %v1681, 1.442695
    %v1683 = vpow.pop %v1682
    %v1684 = vadd.f32 %v1683, 1.0
    %v1685 = vrcp.pop %v1684
    %v1686 = vmul.f32 1.0, %v1685
    %v1687 = vtanh.pop %v1673
    %v1688 = vxor.u32 %v1674, 2147483648
    %v1689 = vmul.f32 %v1688, 1.442695
    %v1690 = vpow.pop %v1689
    %v1691 = vadd.f32 %v1690, 1.0
    %v1692 = vrcp.pop %v1691
    %v1693 = vmul.f32 1.0, %v1692
    %v1694 = vmul.f32 %v1686, %v1521
    %v1695 = vmul.f32 %v1680, %v1687
    %v1696 = vadd.f32 %v1694, %v1695
    %v1697 = vtanh.pop %v1696
    %v1698 = vmul.f32 %v1693, %v1697
    %1699 = vst [vmem:[#allocation3 + $0x30] sm:$0xff] %v1698
    %v1700 = vld [vmem:[#allocation2 + $0xe0] sm:$0xff]
    %v1701 = vld [vmem:[#allocation2 + $0xe8] sm:$0xff]
    %v1702 = vld [vmem:[#allocation2 + $0xf0] sm:$0xff]
    %v1703 = vld [vmem:[#allocation2 + $0xf8] sm:$0xff]
    %1704 = vmatprep.subr.mxu0 %v412
    %1705 = vmatpush1.msra.mxu0 %v411
    %1706 = vmatprep.subr.mxu0 %v416
    %1707 = vmatpush1.msra.mxu0 %v415
    %1708 = vmatprep.subr.mxu0 %v420
    %1709 = vmatpush1.msra.mxu0 %v419
    %1710 = vmatprep.subr.mxu0 %v424
    %1711 = vmatpush1.msra.mxu0 %v423
    %1712 = vmatprep.subr.mxu0 %v428
    %1713 = vmatpush1.msra.mxu0 %v427
    %1714 = vmatprep.subr.mxu0 %v432
    %1715 = vmatpush1.msra.mxu0 %v431
    %1716 = vmatprep.subr.mxu0 %v436
    %1717 = vmatpush1.msra.mxu0 %v435
    %1718 = vmatprep.subr.mxu0 %v440
    %1719 = vmatpush1.msra.mxu0 %v439
    %1720 = vmatprep.subr.mxu0 %v444
    %1721 = vmatpush1.msra.mxu0 %v443
    %1722 = vmatprep.subr.mxu0 %v448
    %1723 = vmatpush1.msra.mxu0 %v447
    %1724 = vmatprep.subr.mxu0 %v452
    %1725 = vmatpush1.msra.mxu0 %v451
    %1726 = vmatprep.subr.mxu0 %v456
    %1727 = vmatpush1.msra.mxu0 %v455
    %1728 = vmatprep.subr.mxu0 %v460
    %1729 = vmatpush1.msra.mxu0 %v459
    %1730 = vmatprep.subr.mxu0 %v464
    %1731 = vmatpush1.msra.mxu0 %v463
    %1732 = vmatprep.subr.mxu0 %v468
    %1733 = vmatpush1.msra.mxu0 %v467
    %1734 = vmatprep.subr.mxu0 %v472
    %1735 = vmatpush1.msra.mxu0 %v471
    %1736 = vmatprep.subr.mxu0 0.0
    %1737 = vmatpush1.msra.mxu0 0.0
    %1738 = vmatprep.subr.mxu0 0.0
    %1739 = vmatpush1.msra.mxu0 0.0
    %1740 = vmatprep.subr.mxu0 0.0
    %1741 = vmatpush1.msra.mxu0 0.0
    %1742 = vmatprep.subr.mxu0 0.0
    %1743 = vmatpush1.msra.mxu0 0.0
    %1744 = vmatprep.subr.mxu0 0.0
    %1745 = vmatpush1.msra.mxu0 0.0
    %1746 = vmatprep.subr.mxu0 0.0
    %1747 = vmatpush1.msra.mxu0 0.0
    %1748 = vmatprep.subr.mxu0 0.0
    %1749 = vmatpush1.msra.mxu0 0.0
    %1750 = vmatprep.subr.mxu0 0.0
    %1751 = vmatpush1.msra.mxu0 0.0
    %1752 = vmatprep.subr.mxu0 0.0
    %1753 = vmatpush1.msra.mxu0 0.0
    %1754 = vmatprep.subr.mxu0 0.0
    %1755 = vmatpush1.msra.mxu0 0.0
    %1756 = vmatprep.subr.mxu0 0.0
    %1757 = vmatpush1.msra.mxu0 0.0
    %1758 = vmatprep.subr.mxu0 0.0
    %1759 = vmatpush1.msra.mxu0 0.0
    %1760 = vmatprep.subr.mxu0 0.0
    %1761 = vmatpush1.msra.mxu0 0.0
    %1762 = vmatprep.subr.mxu0 0.0
    %1763 = vmatpush1.msra.mxu0 0.0
    %1764 = vmatprep.subr.mxu0 0.0
    %1765 = vmatpush1.msra.mxu0 0.0
    %1766 = vmatprep.subr.mxu0 0.0
    %1767 = vmatpush1.msra.mxu0 0.0
    %1768 = vmatprep.mubr.f32.mxu0 0.0
    %1769 = vmatmul.mubr.f32.gmra.mrb[0].mxu0 %v1698
    %v1770 = vpop.f32.mrb[0].mxu0
    %v1771 = vadd.f32 0.0, %v1770
    %v1772 = vpop.f32.mrb[0].mxu0
    %v1773 = vadd.f32 0.0, %v1772
    %1774 = vdwg.mxu0
    %1775 = vmatprep.subr.mxu0 %v414
    %1776 = vmatpush1.msra.mxu0 %v413
    %1777 = vmatprep.subr.mxu0 %v418
    %1778 = vmatpush1.msra.mxu0 %v417
    %1779 = vmatprep.subr.mxu0 %v422
    %1780 = vmatpush1.msra.mxu0 %v421
    %1781 = vmatprep.subr.mxu0 %v426
    %1782 = vmatpush1.msra.mxu0 %v425
    %1783 = vmatprep.subr.mxu0 %v430
    %1784 = vmatpush1.msra.mxu0 %v429
    %1785 = vmatprep.subr.mxu0 %v434
    %1786 = vmatpush1.msra.mxu0 %v433
    %1787 = vmatprep.subr.mxu0 %v438
    %1788 = vmatpush1.msra.mxu0 %v437
    %1789 = vmatprep.subr.mxu0 %v442
    %1790 = vmatpush1.msra.mxu0 %v441
    %1791 = vmatprep.subr.mxu0 %v446
    %1792 = vmatpush1.msra.mxu0 %v445
    %1793 = vmatprep.subr.mxu0 %v450
    %1794 = vmatpush1.msra.mxu0 %v449
    %1795 = vmatprep.subr.mxu0 %v454
    %1796 = vmatpush1.msra.mxu0 %v453
    %1797 = vmatprep.subr.mxu0 %v458
    %1798 = vmatpush1.msra.mxu0 %v457
    %1799 = vmatprep.subr.mxu0 %v462
    %1800 = vmatpush1.msra.mxu0 %v461
    %1801 = vmatprep.subr.mxu0 %v466
    %1802 = vmatpush1.msra.mxu0 %v465
    %1803 = vmatprep.subr.mxu0 %v470
    %1804 = vmatpush1.msra.mxu0 %v469
    %1805 = vmatprep.subr.mxu0 %v474
    %1806 = vmatpush1.msra.mxu0 %v473
    %1807 = vmatprep.subr.mxu0 0.0
    %1808 = vmatpush1.msra.mxu0 0.0
    %1809 = vmatprep.subr.mxu0 0.0
    %1810 = vmatpush1.msra.mxu0 0.0
    %1811 = vmatprep.subr.mxu0 0.0
    %1812 = vmatpush1.msra.mxu0 0.0
    %1813 = vmatprep.subr.mxu0 0.0
    %1814 = vmatpush1.msra.mxu0 0.0
    %1815 = vmatprep.subr.mxu0 0.0
    %1816 = vmatpush1.msra.mxu0 0.0
    %1817 = vmatprep.subr.mxu0 0.0
    %1818 = vmatpush1.msra.mxu0 0.0
    %1819 = vmatprep.subr.mxu0 0.0
    %1820 = vmatpush1.msra.mxu0 0.0
    %1821 = vmatprep.subr.mxu0 0.0
    %1822 = vmatpush1.msra.mxu0 0.0
    %1823 = vmatprep.subr.mxu0 0.0
    %1824 = vmatpush1.msra.mxu0 0.0
    %1825 = vmatprep.subr.mxu0 0.0
    %1826 = vmatpush1.msra.mxu0 0.0
    %1827 = vmatprep.subr.mxu0 0.0
    %1828 = vmatpush1.msra.mxu0 0.0
    %1829 = vmatprep.subr.mxu0 0.0
    %1830 = vmatpush1.msra.mxu0 0.0
    %1831 = vmatprep.subr.mxu0 0.0
    %1832 = vmatpush1.msra.mxu0 0.0
    %1833 = vmatprep.subr.mxu0 0.0
    %1834 = vmatpush1.msra.mxu0 0.0
    %1835 = vmatprep.subr.mxu0 0.0
    %1836 = vmatpush1.msra.mxu0 0.0
    %1837 = vmatprep.subr.mxu0 0.0
    %1838 = vmatpush1.msra.mxu0 0.0
    %1839 = vmatprep.mubr.f32.mxu0 0.0
    %1840 = vmatmul.mubr.f32.gmra.mrb[0].mxu0 %v1698
    %v1841 = vpop.f32.mrb[0].mxu0
    %v1842 = vadd.f32 0.0, %v1841
    %v1843 = vpop.f32.mrb[0].mxu0
    %v1844 = vadd.f32 0.0, %v1843
    %1845 = vdwg.mxu0
    %v1846 = vadd.f32 %v1700, %v1771
    %v1847 = vadd.f32 %v1701, %v1773
    %v1848 = vadd.f32 %v1702, %v1842
    %v1849 = vadd.f32 %v1703, %v1844
    %v1850 = vxor.u32 %v1846, 2147483648
    %v1851 = vmul.f32 %v1850, 1.442695
    %v1852 = vpow.pop %v1851
    %v1853 = vadd.f32 %v1852, 1.0
    %v1854 = vrcp.pop %v1853
    %v1855 = vmul.f32 1.0, %v1854
    %v1856 = vxor.u32 %v1847, 2147483648
    %v1857 = vmul.f32 %v1856, 1.442695
    %v1858 = vpow.pop %v1857
    %v1859 = vadd.f32 %v1858, 1.0
    %v1860 = vrcp.pop %v1859
    %v1861 = vmul.f32 1.0, %v1860
    %v1862 = vtanh.pop %v1848
    %v1863 = vxor.u32 %v1849, 2147483648
    %v1864 = vmul.f32 %v1863, 1.442695
    %v1865 = vpow.pop %v1864
    %v1866 = vadd.f32 %v1865, 1.0
    %v1867 = vrcp.pop %v1866
    %v1868 = vmul.f32 1.0, %v1867
    %v1869 = vmul.f32 %v1861, %v1696
    %v1870 = vmul.f32 %v1855, %v1862
    %v1871 = vadd.f32 %v1869, %v1870
    %v1872 = vtanh.pop %v1871
    %v1873 = vmul.f32 %v1868, %v1872
    %1874 = vst [vmem:[#allocation3 + $0x38] sm:$0xff] %v1873
    %v1875 = vld [vmem:[#allocation3] sm:$0xff]
    %v1876 = vld [vmem:[#allocation3 + $0x8] sm:$0xff]
    %v1877 = vld [vmem:[#allocation3 + $0x10] sm:$0xff]
    %v1878 = vld [vmem:[#allocation3 + $0x18] sm:$0xff]
    %v1879 = vld [vmem:[#allocation3 + $0x20] sm:$0xff]
    %v1880 = vld [vmem:[#allocation3 + $0x28] sm:$0xff]
    %v1881 = vld [vmem:[#allocation3 + $0x30] sm:$0xff]
    %v1882 = vld [vmem:[#allocation3 + $0x38] sm:$0xff]
    %v1883 = vld [vmem:[%s4] sm:$0xff]
    %v1884 = vld [vmem:[%s4 + $0x8] sm:$0xff]
    %v1885 = vld [vmem:[%s4 + $0x10] sm:$0xff]
    %v1886 = vld [vmem:[%s4 + $0x18] sm:$0xff]
    %v1887 = vld [vmem:[%s4 + $0x20] sm:$0xff]
    %v1888 = vld [vmem:[%s4 + $0x28] sm:$0xff]
    %v1889 = vld [vmem:[%s4 + $0x30] sm:$0xff]
    %v1890 = vld [vmem:[%s4 + $0x38] sm:$0xff]
    %v1891 = vld [vmem:[%s4 + $0x40] sm:$0xff]
    %v1892 = vld [vmem:[%s4 + $0x48] sm:$0xff]
    %v1893 = vld [vmem:[%s4 + $0x50] sm:$0xff]
    %v1894 = vld [vmem:[%s4 + $0x58] sm:$0xff]
    %v1895 = vld [vmem:[%s4 + $0x60] sm:$0xff]
    %v1896 = vld [vmem:[%s4 + $0x68] sm:$0xff]
    %v1897 = vld [vmem:[%s4 + $0x70] sm:$0xff]
    %v1898 = vld [vmem:[%s4 + $0x78] sm:$0xff]
    %v1899 = vld [vmem:[%s5] sm:$0x1]
    %v1901 = vlaneseq
    %v1902 = vshrl.u32 %v1901, 7
    %v1903 = vsub.s32 0, %v1902
    %v1904 = vrot.slane %v1899, %v1903
    %1906 = vmatprep.subr.mxu0 0.0
    %1907 = vmatpush1.msra.mxu0 %v1883
    %1908 = vmatprep.subr.mxu0 0.0
    %1909 = vmatpush1.msra.mxu0 %v1884
    %1910 = vmatprep.subr.mxu0 0.0
    %1911 = vmatpush1.msra.mxu0 %v1885
    %1912 = vmatprep.subr.mxu0 0.0
    %1913 = vmatpush1.msra.mxu0 %v1886
    %1914 = vmatprep.subr.mxu0 0.0
    %1915 = vmatpush1.msra.mxu0 %v1887
    %1916 = vmatprep.subr.mxu0 0.0
    %1917 = vmatpush1.msra.mxu0 %v1888
    %1918 = vmatprep.subr.mxu0 0.0
    %1919 = vmatpush1.msra.mxu0 %v1889
    %1920 = vmatprep.subr.mxu0 0.0
    %1921 = vmatpush1.msra.mxu0 %v1890
    %1922 = vmatprep.subr.mxu0 0.0
    %1923 = vmatpush1.msra.mxu0 %v1891
    %1924 = vmatprep.subr.mxu0 0.0
    %1925 = vmatpush1.msra.mxu0 %v1892
    %1926 = vmatprep.subr.mxu0 0.0
    %1927 = vmatpush1.msra.mxu0 %v1893
    %1928 = vmatprep.subr.mxu0 0.0
    %1929 = vmatpush1.msra.mxu0 %v1894
    %1930 = vmatprep.subr.mxu0 0.0
    %1931 = vmatpush1.msra.mxu0 %v1895
    %1932 = vmatprep.subr.mxu0 0.0
    %1933 = vmatpush1.msra.mxu0 %v1896
    %1934 = vmatprep.subr.mxu0 0.0
    %1935 = vmatpush1.msra.mxu0 %v1897
    %1936 = vmatprep.subr.mxu0 0.0
    %1937 = vmatpush1.msra.mxu0 %v1898
    %1938 = vmatprep.subr.mxu0 0.0
    %1939 = vmatpush1.msra.mxu0 0.0
    %1940 = vmatprep.subr.mxu0 0.0
    %1941 = vmatpush1.msra.mxu0 0.0
    %1942 = vmatprep.subr.mxu0 0.0
    %1943 = vmatpush1.msra.mxu0 0.0
    %1944 = vmatprep.subr.mxu0 0.0
    %1945 = vmatpush1.msra.mxu0 0.0
    %1946 = vmatprep.subr.mxu0 0.0
    %1947 = vmatpush1.msra.mxu0 0.0
    %1948 = vmatprep.subr.mxu0 0.0
    %1949 = vmatpush1.msra.mxu0 0.0
    %1950 = vmatprep.subr.mxu0 0.0
    %1951 = vmatpush1.msra.mxu0 0.0
    %1952 = vmatprep.subr.mxu0 0.0
    %1953 = vmatpush1.msra.mxu0 0.0
    %1954 = vmatprep.subr.mxu0 0.0
    %1955 = vmatpush1.msra.mxu0 0.0
    %1956 = vmatprep.subr.mxu0 0.0
    %1957 = vmatpush1.msra.mxu0 0.0
    %1958 = vmatprep.subr.mxu0 0.0
    %1959 = vmatpush1.msra.mxu0 0.0
    %1960 = vmatprep.subr.mxu0 0.0
    %1961 = vmatpush1.msra.mxu0 0.0
    %1962 = vmatprep.subr.mxu0 0.0
    %1963 = vmatpush1.msra.mxu0 0.0
    %1964 = vmatprep.subr.mxu0 0.0
    %1965 = vmatpush1.msra.mxu0 0.0
    %1966 = vmatprep.subr.mxu0 0.0
    %1967 = vmatpush1.msra.mxu0 0.0
    %1968 = vmatprep.subr.mxu0 0.0
    %1969 = vmatpush1.msra.mxu0 0.0
    %1970 = vmatprep.mubr.f32.mxu0 0.0
    %1971 = vmatmul.mubr.f32.gmra.mrb[0].mxu0 %v1875
    %v1972 = vpop.f32.mrb[0].mxu0
    %v1973 = vadd.f32 %v1904, %v1972
    %v1974 = vpop.f32.mrb[0].mxu0
    %1975 = vmatprep.mubr.f32.mxu0 0.0
    %1976 = vmatmul.mubr.f32.gmra.mrb[0].mxu0 %v1876
    %v1977 = vpop.f32.mrb[0].mxu0
    %v1978 = vadd.f32 %v1904, %v1977
    %v1979 = vpop.f32.mrb[0].mxu0
    %1980 = vmatprep.mubr.f32.mxu0 0.0
    %1981 = vmatmul.mubr.f32.gmra.mrb[0].mxu0 %v1877
    %v1982 = vpop.f32.mrb[0].mxu0
    %v1983 = vadd.f32 %v1904, %v1982
    %v1984 = vpop.f32.mrb[0].mxu0
    %1985 = vmatprep.mubr.f32.mxu0 0.0
    %1986 = vmatmul.mubr.f32.gmra.mrb[0].mxu0 %v1878
    %v1987 = vpop.f32.mrb[0].mxu0
    %v1988 = vadd.f32 %v1904, %v1987
    %v1989 = vpop.f32.mrb[0].mxu0
    %1990 = vmatprep.mubr.f32.mxu0 0.0
    %1991 = vmatmul.mubr.f32.gmra.mrb[0].mxu0 %v1879
    %v1992 = vpop.f32.mrb[0].mxu0
    %v1993 = vadd.f32 %v1904, %v1992
    %v1994 = vpop.f32.mrb[0].mxu0
    %1995 = vmatprep.mubr.f32.mxu0 0.0
    %1996 = vmatmul.mubr.f32.gmra.mrb[0].mxu0 %v1880
    %v1997 = vpop.f32.mrb[0].mxu0
    %v1998 = vadd.f32 %v1904, %v1997
    %v1999 = vpop.f32.mrb[0].mxu0
    %2000 = vmatprep.mubr.f32.mxu0 0.0
    %2001 = vmatmul.mubr.f32.gmra.mrb[0].mxu0 %v1881
    %v2002 = vpop.f32.mrb[0].mxu0
    %v2003 = vadd.f32 %v1904, %v2002
    %v2004 = vpop.f32.mrb[0].mxu0
    %2005 = vmatprep.mubr.f32.mxu0 0.0
    %2006 = vmatmul.mubr.f32.gmra.mrb[0].mxu0 %v1882
    %v2007 = vpop.f32.mrb[0].mxu0
    %v2008 = vadd.f32 %v1904, %v2007
    %v2009 = vpop.f32.mrb[0].mxu0
    %2010 = vdwg.mxu0
    %v2011 = vmax.f32 %v1973, 0.0
    %v2012 = vmax.f32 %v1978, 0.0
    %v2013 = vmax.f32 %v1983, 0.0
    %v2014 = vmax.f32 %v1988, 0.0
    %v2015 = vmax.f32 %v1993, 0.0
    %v2016 = vmax.f32 %v1998, 0.0
    %v2017 = vmax.f32 %v2003, 0.0
    %v2018 = vmax.f32 %v2008, 0.0
    %v2019 = vld [vmem:[%s6] sm:$0xff]
    %v2020 = vld [vmem:[%s6 + $0x8] sm:$0xff]
    %v2021 = vld [vmem:[%s6 + $0x10] sm:$0xff]
    %v2022 = vld [vmem:[%s6 + $0x18] sm:$0xff]
    %v2023 = vld [vmem:[%s6 + $0x20] sm:$0xff]
    %v2024 = vld [vmem:[%s6 + $0x28] sm:$0xff]
    %v2025 = vld [vmem:[%s6 + $0x30] sm:$0xff]
    %v2026 = vld [vmem:[%s6 + $0x38] sm:$0xff]
    %v2027 = vld [vmem:[#allocation4] sm:$0x1]
    %v2029 = vlaneseq
    %v2030 = vshrl.u32 %v2029, 7
    %v2031 = vsub.s32 0, %v2030
    %v2032 = vrot.slane %v2027, %v2031
    %vm2034 = vcmask 523264
    %v2036 = vsel %vm2034, %v2011, 0
    %v2039 = vsel %vm2034, %v2012, 0
    %v2042 = vsel %vm2034, %v2013, 0
    %v2045 = vsel %vm2034, %v2014, 0
    %v2048 = vsel %vm2034, %v2015, 0
    %v2051 = vsel %vm2034, %v2016, 0
    %v2054 = vsel %vm2034, %v2017, 0
    %v2057 = vsel %vm2034, %v2018, 0
    %2059 = vmatprep.subr.mxu0 0.0
    %2060 = vmatpush1.msra.mxu0 %v2019
    %2061 = vmatprep.subr.mxu0 0.0
    %2062 = vmatpush1.msra.mxu0 %v2020
    %2063 = vmatprep.subr.mxu0 0.0
    %2064 = vmatpush1.msra.mxu0 %v2021
    %2065 = vmatprep.subr.mxu0 0.0
    %2066 = vmatpush1.msra.mxu0 %v2022
    %2067 = vmatprep.subr.mxu0 0.0
    %2068 = vmatpush1.msra.mxu0 %v2023
    %2069 = vmatprep.subr.mxu0 0.0
    %2070 = vmatpush1.msra.mxu0 %v2024
    %2071 = vmatprep.subr.mxu0 0.0
    %2072 = vmatpush1.msra.mxu0 %v2025
    %2073 = vmatprep.subr.mxu0 0.0
    %2074 = vmatpush1.msra.mxu0 %v2026
    %2075 = vmatprep.subr.mxu0 0.0
    %2076 = vmatpush1.msra.mxu0 0.0
    %2077 = vmatprep.subr.mxu0 0.0
    %2078 = vmatpush1.msra.mxu0 0.0
    %2079 = vmatprep.subr.mxu0 0.0
    %2080 = vmatpush1.msra.mxu0 0.0
    %2081 = vmatprep.subr.mxu0 0.0
    %2082 = vmatpush1.msra.mxu0 0.0
    %2083 = vmatprep.subr.mxu0 0.0
    %2084 = vmatpush1.msra.mxu0 0.0
    %2085 = vmatprep.subr.mxu0 0.0
    %2086 = vmatpush1.msra.mxu0 0.0
    %2087 = vmatprep.subr.mxu0 0.0
    %2088 = vmatpush1.msra.mxu0 0.0
    %2089 = vmatprep.subr.mxu0 0.0
    %2090 = vmatpush1.msra.mxu0 0.0
    %2091 = vmatprep.subr.mxu0 0.0
    %2092 = vmatpush1.msra.mxu0 0.0
    %2093 = vmatprep.subr.mxu0 0.0
    %2094 = vmatpush1.msra.mxu0 0.0
    %2095 = vmatprep.subr.mxu0 0.0
    %2096 = vmatpush1.msra.mxu0 0.0
    %2097 = vmatprep.subr.mxu0 0.0
    %2098 = vmatpush1.msra.mxu0 0.0
    %2099 = vmatprep.subr.mxu0 0.0
    %2100 = vmatpush1.msra.mxu0 0.0
    %2101 = vmatprep.subr.mxu0 0.0
    %2102 = vmatpush1.msra.mxu0 0.0
    %2103 = vmatprep.subr.mxu0 0.0
    %2104 = vmatpush1.msra.mxu0 0.0
    %2105 = vmatprep.subr.mxu0 0.0
    %2106 = vmatpush1.msra.mxu0 0.0
    %2107 = vmatprep.subr.mxu0 0.0
    %2108 = vmatpush1.msra.mxu0 0.0
    %2109 = vmatprep.subr.mxu0 0.0
    %2110 = vmatpush1.msra.mxu0 0.0
    %2111 = vmatprep.subr.mxu0 0.0
    %2112 = vmatpush1.msra.mxu0 0.0
    %2113 = vmatprep.subr.mxu0 0.0
    %2114 = vmatpush1.msra.mxu0 0.0
    %2115 = vmatprep.subr.mxu0 0.0
    %2116 = vmatpush1.msra.mxu0 0.0
    %2117 = vmatprep.subr.mxu0 0.0
    %2118 = vmatpush1.msra.mxu0 0.0
    %2119 = vmatprep.subr.mxu0 0.0
    %2120 = vmatpush1.msra.mxu0 0.0
    %2121 = vmatprep.subr.mxu0 0.0
    %2122 = vmatpush1.msra.mxu0 0.0
    %2123 = vmatprep.mubr.f32.mxu0 0.0
    %2124 = vmatmul.mubr.f32.gmra.mrb[0].mxu0 %v2036
    %v2125 = vpop.f32.mrb[0].mxu0
    %v2126 = vadd.f32 %v2032, %v2125
    %v2127 = vpop.f32.mrb[0].mxu0
    %2128 = vmatprep.mubr.f32.mxu0 0.0
    %2129 = vmatmul.mubr.f32.gmra.mrb[0].mxu0 %v2039
    %v2130 = vpop.f32.mrb[0].mxu0
    %v2131 = vadd.f32 %v2032, %v2130
    %v2132 = vpop.f32.mrb[0].mxu0
    %2133 = vmatprep.mubr.f32.mxu0 0.0
    %2134 = vmatmul.mubr.f32.gmra.mrb[0].mxu0 %v2042
    %v2135 = vpop.f32.mrb[0].mxu0
    %v2136 = vadd.f32 %v2032, %v2135
    %v2137 = vpop.f32.mrb[0].mxu0
    %2138 = vmatprep.mubr.f32.mxu0 0.0
    %2139 = vmatmul.mubr.f32.gmra.mrb[0].mxu0 %v2045
    %v2140 = vpop.f32.mrb[0].mxu0
    %v2141 = vadd.f32 %v2032, %v2140
    %v2142 = vpop.f32.mrb[0].mxu0
    %2143 = vmatprep.mubr.f32.mxu0 0.0
    %2144 = vmatmul.mubr.f32.gmra.mrb[0].mxu0 %v2048
    %v2145 = vpop.f32.mrb[0].mxu0
    %v2146 = vadd.f32 %v2032, %v2145
    %v2147 = vpop.f32.mrb[0].mxu0
    %2148 = vmatprep.mubr.f32.mxu0 0.0
    %2149 = vmatmul.mubr.f32.gmra.mrb[0].mxu0 %v2051
    %v2150 = vpop.f32.mrb[0].mxu0
    %v2151 = vadd.f32 %v2032, %v2150
    %v2152 = vpop.f32.mrb[0].mxu0
    %2153 = vmatprep.mubr.f32.mxu0 0.0
    %2154 = vmatmul.mubr.f32.gmra.mrb[0].mxu0 %v2054
    %v2155 = vpop.f32.mrb[0].mxu0
    %v2156 = vadd.f32 %v2032, %v2155
    %v2157 = vpop.f32.mrb[0].mxu0
    %2158 = vmatprep.mubr.f32.mxu0 0.0
    %2159 = vmatmul.mubr.f32.gmra.mrb[0].mxu0 %v2057
    %v2160 = vpop.f32.mrb[0].mxu0
    %v2161 = vadd.f32 %v2032, %v2160
    %v2162 = vpop.f32.mrb[0].mxu0
    %2163 = vdwg.mxu0
    %v2164 = vxor.u32 %v2126, 2147483648
    %v2165 = vxor.u32 %v2131, 2147483648
    %v2166 = vxor.u32 %v2136, 2147483648
    %v2167 = vxor.u32 %v2141, 2147483648
    %v2168 = vxor.u32 %v2146, 2147483648
    %v2169 = vxor.u32 %v2151, 2147483648
    %v2170 = vxor.u32 %v2156, 2147483648
    %v2171 = vxor.u32 %v2161, 2147483648
    %v2172 = vmul.f32 %v2164, 1.442695
    %v2173 = vpow.pop %v2172
    %v2174 = vmul.f32 %v2165, 1.442695
    %v2175 = vpow.pop %v2174
    %v2176 = vmul.f32 %v2166, 1.442695
    %v2177 = vpow.pop %v2176
    %v2178 = vmul.f32 %v2167, 1.442695
    %v2179 = vpow.pop %v2178
    %v2180 = vmul.f32 %v2168, 1.442695
    %v2181 = vpow.pop %v2180
    %v2182 = vmul.f32 %v2169, 1.442695
    %v2183 = vpow.pop %v2182
    %v2184 = vmul.f32 %v2170, 1.442695
    %v2185 = vpow.pop %v2184
    %v2186 = vmul.f32 %v2171, 1.442695
    %v2187 = vpow.pop %v2186
    %v2188 = vadd.f32 %v2173, 1.0
    %v2189 = vadd.f32 %v2175, 1.0
    %v2190 = vadd.f32 %v2177, 1.0
    %v2191 = vadd.f32 %v2179, 1.0
    %v2192 = vadd.f32 %v2181, 1.0
    %v2193 = vadd.f32 %v2183, 1.0
    %v2194 = vadd.f32 %v2185, 1.0
    %v2195 = vadd.f32 %v2187, 1.0
    %v2196 = vrcp.pop %v2188
    %v2197 = vmul.f32 1.0, %v2196
    %v2198 = vrcp.pop %v2189
    %v2199 = vmul.f32 1.0, %v2198
    %v2200 = vrcp.pop %v2190
    %v2201 = vmul.f32 1.0, %v2200
    %v2202 = vrcp.pop %v2191
    %v2203 = vmul.f32 1.0, %v2202
    %v2204 = vrcp.pop %v2192
    %v2205 = vmul.f32 1.0, %v2204
    %v2206 = vrcp.pop %v2193
    %v2207 = vmul.f32 1.0, %v2206
    %v2208 = vrcp.pop %v2194
    %v2209 = vmul.f32 1.0, %v2208
    %v2210 = vrcp.pop %v2195
    %v2211 = vmul.f32 1.0, %v2210
    %vm2212 = vcmask 7168
    %2213 = vst.msk [vmem:[%s8] sm:$0xff] %vm2212, %v2197
    %2214 = vst.msk [vmem:[%s8 + $0x8] sm:$0xff] %vm2212, %v2199
    %2215 = vst.msk [vmem:[%s8 + $0x10] sm:$0xff] %vm2212, %v2201
    %2216 = vst.msk [vmem:[%s8 + $0x18] sm:$0xff] %vm2212, %v2203
    %2217 = vst.msk [vmem:[%s8 + $0x20] sm:$0xff] %vm2212, %v2205
    %2218 = vst.msk [vmem:[%s8 + $0x28] sm:$0xff] %vm2212, %v2207
    %2219 = vst.msk [vmem:[%s8 + $0x30] sm:$0xff] %vm2212, %v2209
    %2220 = vst.msk [vmem:[%s8 + $0x38] sm:$0xff] %vm2212, %v2211
    // Predicated region
    $region42: #{tpu_custom_call.1} parent=1 // pred_check
      _
    $region43: #{tpu_custom_call.1} parent=1 // pred_check_branch
      %2222 = sbr.rel (0) target = $region45
    $region44: #{tpu_custom_call.1} parent=1 // pred_region
      _
    $region45: #{tpu_custom_call.1} parent=1 // pred_fallthru
      _
    // Predicated region
    $region46: #{tpu_custom_call.1} parent=1 // pred_check
      _
    $region47: #{tpu_custom_call.1} parent=1 // pred_check_branch
      %2224 = sbr.rel (0) target = $region49
    $region48: #{tpu_custom_call.1} parent=1 // pred_region
      _
    $region49: #{tpu_custom_call.1} parent=1 // pred_fallthru
      _
    %2225 = vsyncpa [#allocation6], 1
    %2226 = vsyncpa [#allocation8], 1

</llo_original>
